<compile_context>
chip_gen: v7x
topology: tpu7x:2x2x1
jax: 0.10.0
libtpu: 0.0.40
codegen_flags: <defaults>
</compile_context>

<pallas_src>
import functools

import jax
import jax.numpy as jnp
from jax.experimental import pallas as pl
from jax.experimental.pallas import tpu as pltpu

HIGHEST = jax.lax.Precision.HIGHEST
_VMEM_LIMIT = 32 * 1024 * 1024   # explicit scoped-VMEM budget (safe on v5e/v6e/v7x)


# ---------------------------------------------------------------------------
# helpers
# ---------------------------------------------------------------------------

def _pick_tile(hw, cap=2048):
    """Lane tile over the flattened H*W axis: the full extent when small,
    otherwise the largest multiple-of-128 divisor of hw that is <= cap (keeps
    per-step VMEM bounded and leaves headroom for double buffering)."""
    if hw <= cap:
        return hw
    for t in range(cap - cap % 128, 0, -128):
        if hw % t == 0:
            return t
    return hw   # no nice divisor: fall back to one full-extent block


def _lane_shift(x, s):
    """out[:, p] = x[:, (p + s) mod n]  (circular shift along the lane axis).

    Written as a concat of two static lane slices (same machinery RoPE kernels
    use); `pltpu.roll` would also work as a single XLU rotate.
    """
    n = x.shape[-1]
    k = s % n
    if k == 0:
        return x
    return jnp.concatenate([x[:, k:], x[:, :k]], axis=1)


def _tap_masks(H, W):
    """(9, 1, H*W) 0/1 masks: tap t=(a,b) is valid at pixel p iff its source
    pixel (row+a-1, col+b-1) lies inside the image (zero padding otherwise)."""
    hw = H * W
    r = jnp.arange(hw, dtype=jnp.int32) // W
    c = jnp.arange(hw, dtype=jnp.int32) % W
    masks = []
    for t in range(9):
        da, db = t // 3 - 1, t % 3 - 1
        ok = (r + da >= 0) & (r + da < H) & (c + db >= 0) & (c + db < W)
        masks.append(ok.astype(jnp.float32))
    return jnp.stack(masks, axis=0).reshape(9, 1, hw)


# ---------------------------------------------------------------------------
# Pallas kernels
# ---------------------------------------------------------------------------

def _fsm_offset_kernel(x_ref, up_ref, wfsm_ref, w1_ref, w2_ref,
                       arm_ref, off_ref):
    """Fused FeatureSelectionModule + offset 1x1 conv, one (batch, HW-tile).

    x: (1, Cin, T) bf16        wfsm: (1, Cout, Cin) bf16  (atten folded in)
    up: (1, Cout, T) bf16      w1/w2: (Cout, Cout) bf16   (w2 already * 2)
    arm out: (1, Cout, T) bf16; off out: (1, Cout, T) f32.  Lane-dense stores.
    """
    arm = jnp.dot(wfsm_ref[0], x_ref[0], preferred_element_type=jnp.float32)
    arm_bf = arm.astype(jnp.bfloat16)
    arm_ref[0] = arm_bf
    off_ref[0] = (
        jnp.dot(w1_ref[...], arm_bf, preferred_element_type=jnp.float32)
        + jnp.dot(w2_ref[...], up_ref[0], preferred_element_type=jnp.float32))


def _pconv3x3_kernel(off_ref, wp_ref, mask_ref, bias_ref, doff_ref, *, W):
    """3x3 conv (pad 1, bias) as 9 shifted matmuls on the flattened HW axis.

    off: (1, C, HW) f32; wp: (9, Co, C) bf16; mask: (9, 1, HW) f32;
    bias: (Co, 1) f32; doff out: (1, Co, HW) f32.  No im2col in HBM.
    """
    x = off_ref[0]                                     # (C, HW)
    acc = jnp.zeros(doff_ref.shape[1:], jnp.float32)   # (Co, HW)
    for t in range(9):
        da, db = t // 3 - 1, t % 3 - 1
        shifted = _lane_shift(x, da * W + db)
        tap = (shifted * mask_ref[t]).astype(jnp.bfloat16)
        acc = acc + jnp.dot(wp_ref[t], tap, preferred_element_type=jnp.float32)
    doff_ref[0] = acc + bias_ref[...]


def _deform_proj_kernel(s_ref, wd_ref, arm_ref, o_ref):
    """relu(Wd @ sampled_taps) + feat_arm, one (batch, HW-tile).

    s: (1, C*9, T) bf16; wd: (Cout, C*9) bf16; arm: (1, Cout, T) bf16;
    out: (1, Cout, T) f32 (lane-dense).
    """
    y = jnp.dot(wd_ref[...], s_ref[0], preferred_element_type=jnp.float32)
    o_ref[0] = jnp.maximum(y, 0.0) + arm_ref[0].astype(jnp.float32)


# ---------------------------------------------------------------------------
# pallas_call wrappers
# ---------------------------------------------------------------------------

def fused_fsm_offset(x_bf, up_bf, wfsm_b, w1, w2s):
    B, Cin, HW = x_bf.shape
    Cout = wfsm_b.shape[1]
    tile = _pick_tile(HW)
    flops = 2 * B * HW * Cout * (Cin + 2 * Cout)
    bytes_acc = (2 * (x_bf.size + up_bf.size + wfsm_b.size + w1.size + w2s.size)
                 + B * Cout * HW * (2 + 4))
    return pl.pallas_call(
        _fsm_offset_kernel,
        out_shape=(jax.ShapeDtypeStruct((B, Cout, HW), jnp.bfloat16),
                   jax.ShapeDtypeStruct((B, Cout, HW), jnp.float32)),
        grid=(B, HW // tile),
        in_specs=[
            pl.BlockSpec((1, Cin, tile), lambda b, t: (b, 0, t)),
            pl.BlockSpec((1, Cout, tile), lambda b, t: (b, 0, t)),
            pl.BlockSpec((1, Cout, Cin), lambda b, t: (b, 0, 0)),
            pl.BlockSpec((Cout, Cout), lambda b, t: (0, 0)),
            pl.BlockSpec((Cout, Cout), lambda b, t: (0, 0)),
        ],
        out_specs=(pl.BlockSpec((1, Cout, tile), lambda b, t: (b, 0, t)),
                   pl.BlockSpec((1, Cout, tile), lambda b, t: (b, 0, t))),
        compiler_params=pltpu.CompilerParams(
            dimension_semantics=("parallel", "parallel"),
            vmem_limit_bytes=_VMEM_LIMIT),
        cost_estimate=pl.CostEstimate(flops=int(flops), transcendentals=0,
                                      bytes_accessed=int(bytes_acc)),
    )(x_bf, up_bf, wfsm_b, w1, w2s)


def pconv3x3(off, w_pconv, b_pconv, H, W):
    B, C, HW = off.shape
    Co = w_pconv.shape[0]                                     # 18 offsets
    wp = jnp.transpose(w_pconv.reshape(Co, C, 9), (2, 0, 1)).astype(jnp.bfloat16)
    masks = _tap_masks(H, W)
    bias = b_pconv.reshape(Co, 1).astype(jnp.float32)
    flops = 2 * B * HW * Co * C * 9
    bytes_acc = (4 * off.size + 2 * wp.size + 4 * masks.size + 4 * bias.size
                 + 4 * B * Co * HW)
    return pl.pallas_call(
        functools.partial(_pconv3x3_kernel, W=W),
        out_shape=jax.ShapeDtypeStruct((B, Co, HW), jnp.float32),
        grid=(B,),
        in_specs=[
            pl.BlockSpec((1, C, HW), lambda b: (b, 0, 0)),
            pl.BlockSpec((9, Co, C), lambda b: (0, 0, 0)),
            pl.BlockSpec((9, 1, HW), lambda b: (0, 0, 0)),
            pl.BlockSpec((Co, 1), lambda b: (0, 0)),
        ],
        out_specs=pl.BlockSpec((1, Co, HW), lambda b: (b, 0, 0)),
        compiler_params=pltpu.CompilerParams(
            dimension_semantics=("parallel",),
            vmem_limit_bytes=_VMEM_LIMIT),
        cost_estimate=pl.CostEstimate(flops=int(flops), transcendentals=0,
                                      bytes_accessed=int(bytes_acc)),
    )(off, wp, masks, bias)


def deform_project(samples, wd, arm_bf):
    B, K, HW = samples.shape
    Cout = wd.shape[0]
    tile = _pick_tile(HW)
    flops = 2 * B * HW * Cout * K
    bytes_acc = 2 * (samples.size + wd.size + arm_bf.size) + 4 * B * Cout * HW
    return pl.pallas_call(
        _deform_proj_kernel,
        out_shape=jax.ShapeDtypeStruct((B, Cout, HW), jnp.float32),
        grid=(B, HW // tile),
        in_specs=[
            pl.BlockSpec((1, K, tile), lambda b, t: (b, 0, t)),
            pl.BlockSpec((Cout, K), lambda b, t: (0, 0)),
            pl.BlockSpec((1, Cout, tile), lambda b, t: (b, 0, t)),
        ],
        out_specs=pl.BlockSpec((1, Cout, tile), lambda b, t: (b, 0, t)),
        compiler_params=pltpu.CompilerParams(
            dimension_semantics=("parallel", "parallel"),
            vmem_limit_bytes=_VMEM_LIMIT),
        cost_estimate=pl.CostEstimate(flops=int(flops), transcendentals=0,
                                      bytes_accessed=int(bytes_acc)),
    )(samples, wd, arm_bf)


# ---------------------------------------------------------------------------
# JAX glue: deformable bilinear sampling (data-dependent gather)
# ---------------------------------------------------------------------------

def deform_sample(z, doff, ks=3):
    """Bilinearly sample z (B, C, H, W) at the 3x3 taps deformed by doff
    (B, 2*ks*ks, H, W; first half = row offsets, second half = col offsets).

    Returns (B, C*ks*ks, H*W) bf16 with K ordered as c*9 + (a*3 + b), i.e.
    directly consumable by the lane-dense projection kernel.

    # TODO(synk): data-dependent gather stays in plain JAX (a Pallas version
    # would need a manual DMA gather); the spatial index is shared across
    # channels so the int32 index volume does not scale with C.
    """
    B, C, H, W = z.shape
    N = ks * ks
    pad = ks // 2
    zp = jnp.pad(z, ((0, 0), (0, 0), (pad, pad), (pad, pad)))
    Hp, Wp = H + 2 * pad, W + 2 * pad

    rows = jnp.arange(H, dtype=jnp.float32)
    cols = jnp.arange(W, dtype=jnp.float32)
    taps = jnp.arange(ks, dtype=jnp.float32) - pad
    pa = jnp.repeat(taps, ks)                       # row offset of tap a*3+b
    pb = jnp.tile(taps, ks)                         # col offset of tap a*3+b

    dr = doff[:, :N]                                # (B, N, H, W)
    dc = doff[:, N:]
    pr = rows[None, None, :, None] + pad + pa[None, :, None, None] + dr
    pc = cols[None, None, None, :] + pad + pb[None, :, None, None] + dc
    pr = jnp.clip(pr, 0.0, Hp - 1.0)
    pc = jnp.clip(pc, 0.0, Wp - 1.0)

    r0 = jnp.floor(pr)
    c0 = jnp.floor(pc)
    fr = pr - r0
    fc = pc - c0
    r0i = r0.astype(jnp.int32)
    c0i = c0.astype(jnp.int32)
    r1i = jnp.minimum(r0i + 1, Hp - 1)
    c1i = jnp.minimum(c0i + 1, Wp - 1)

    zf = zp.reshape(B, C, Hp * Wp)

    def gather(ri, ci):
        idx = (ri * Wp + ci).reshape(B, N * H * W)     # shared across channels
        g = jax.vmap(lambda zb, ib: jnp.take(zb, ib, axis=1))(zf, idx)
        return g.reshape(B, C, N, H * W)

    v00 = gather(r0i, c0i)
    v01 = gather(r0i, c1i)
    v10 = gather(r1i, c0i)
    v11 = gather(r1i, c1i)
    fr = fr.reshape(B, 1, N, H * W)
    fc = fc.reshape(B, 1, N, H * W)
    samples = ((1 - fr) * (1 - fc) * v00 + (1 - fr) * fc * v01
               + fr * (1 - fc) * v10 + fr * fc * v11)   # (B, C, N, HW)
    return samples.reshape(B, C * N, H * W).astype(jnp.bfloat16)


# ---------------------------------------------------------------------------
# Parameters
# ---------------------------------------------------------------------------

def init_params(key, in_nc, out_nc, ks=3):
    N = ks * ks
    keys = jax.random.split(key, 6)

    def w(k, shape):
        fan_in = 1
        for d in shape[1:]:
            fan_in *= d
        return jax.random.normal(k, shape, jnp.float32) / jnp.sqrt(float(fan_in))

    return dict(
        w_atten=w(keys[0], (in_nc, in_nc)),            # FSM.conv_atten 1x1 (no bias)
        w_fsm=w(keys[1], (out_nc, in_nc)),             # FSM.conv 1x1 (no bias)
        w_off=w(keys[2], (out_nc, 2 * out_nc)),        # offset 1x1 (no bias)
        w_pconv=w(keys[3], (2 * N, out_nc, ks, ks)),   # DeformConv2D.p_conv
        b_pconv=0.1 * jax.random.normal(keys[4], (2 * N,), jnp.float32),
        w_dconv=w(keys[5], (out_nc, out_nc, ks, ks)),  # DeformConv2D.conv
    )


# ---------------------------------------------------------------------------
# Forward pass (Pallas)
# ---------------------------------------------------------------------------

def feature_align_pallas(params, feat_l, feat_s):
    B, Cin, H, W = feat_l.shape
    Cout = params["w_fsm"].shape[0]
    HW = H * W

    if feat_s.shape[2:] != (H, W):
        # F.interpolate(bilinear, align_corners=False) == half-pixel bilinear.
        feat_up = jax.image.resize(feat_s, (B, feat_s.shape[1], H, W),
                                   method="bilinear")
    else:
        feat_up = feat_s

    xl = feat_l.reshape(B, Cin, HW)                 # channels-first, HW = lanes
    up = feat_up.reshape(B, Cout, HW)

    # FSM attention: mean over HW first (O(Cin^2) matmul on a (B, Cin) vector),
    # then fold the per-(batch, in-channel) scale (1 + atten) into the 1x1 weight.
    xm = jnp.mean(xl, axis=2)                                        # (B, Cin)
    atten = jax.nn.sigmoid(xm @ params["w_atten"].T)                 # (B, Cin)
    wfsm_b = (params["w_fsm"][None, :, :]
              * (1.0 + atten)[:, None, :]).astype(jnp.bfloat16)      # (B,Cout,Cin)

    # offset conv split over the concat; fold the 2x into the up-branch weight.
    w1 = params["w_off"][:, :Cout].astype(jnp.bfloat16)
    w2s = (2.0 * params["w_off"][:, Cout:]).astype(jnp.bfloat16)

    arm_bf, off = fused_fsm_offset(xl.astype(jnp.bfloat16),
                                   up.astype(jnp.bfloat16),
                                   wfsm_b, w1, w2s)   # (B,Cout,HW) bf16 / f32

    # DeformConv2D (assumed v1) applied to `off`.
    doff = pconv3x3(off, params["w_pconv"], params["b_pconv"], H, W)  # (B,18,HW)
    samples = deform_sample(off.reshape(B, Cout, H, W),
                            doff.reshape(B, 18, H, W), ks=3)   # (B,Cout*9,HW)
    wd = params["w_dconv"].reshape(Cout, Cout * 9).astype(jnp.bfloat16)
    out = deform_project(samples, wd, arm_bf)                  # (B, Cout, HW)
    return out.reshape(B, Cout, H, W)


# ---------------------------------------------------------------------------
# Pure-JAX reference (independent data path, same bf16 rounding points)
# ---------------------------------------------------------------------------

def _deform_sample_ref(z, off, ks=3):
    """Channels-last reference bilinear sampler -> (B*H*W, C*ks*ks)."""
    B, C, H, W = z.shape
    N = ks * ks
    pad = ks // 2
    zp = jnp.pad(z, ((0, 0), (0, 0), (pad, pad), (pad, pad)))
    Hp, Wp = H + 2 * pad, W + 2 * pad

    rows = jnp.arange(H, dtype=jnp.float32)
    cols = jnp.arange(W, dtype=jnp.float32)
    taps = jnp.arange(ks, dtype=jnp.float32) - pad
    pa = jnp.repeat(taps, ks)
    pb = jnp.tile(taps, ks)

    dr = off[:, :N]
    dc = off[:, N:]
    pr = rows[None, None, :, None] + pad + pa[None, :, None, None] + dr
    pc = cols[None, None, None, :] + pad + pb[None, :, None, None] + dc
    pr = jnp.clip(pr, 0.0, Hp - 1.0)
    pc = jnp.clip(pc, 0.0, Wp - 1.0)

    r0 = jnp.floor(pr)
    c0 = jnp.floor(pc)
    fr = pr - r0
    fc = pc - c0
    r0i = r0.astype(jnp.int32)
    c0i = c0.astype(jnp.int32)
    r1i = jnp.minimum(r0i + 1, Hp - 1)
    c1i = jnp.minimum(c0i + 1, Wp - 1)

    zf = zp.reshape(B, C, Hp * Wp)

    def gather(ri, ci):
        idx = (ri * Wp + ci).reshape(B, 1, N * H * W)
        idx = jnp.broadcast_to(idx, (B, C, N * H * W))
        return jnp.take_along_axis(zf, idx, axis=2).reshape(B, C, N, H, W)

    v00 = gather(r0i, c0i)
    v01 = gather(r0i, c1i)
    v10 = gather(r1i, c0i)
    v11 = gather(r1i, c1i)
    fr = fr[:, None]
    fc = fc[:, None]
    samples = ((1 - fr) * (1 - fc) * v00 + (1 - fr) * fc * v01
               + fr * (1 - fc) * v10 + fr * fc * v11)
    return jnp.transpose(samples, (0, 3, 4, 1, 2)).reshape(B * H * W, C * N)


def reference_forward(params, feat_l, feat_s):
    """Mirrors the PyTorch forward (and the Pallas path's bf16 rounding points)
    with an independent channels-last / lax.conv data path."""
    B, Cin, H, W = feat_l.shape
    Cout = params["w_fsm"].shape[0]
    HW = H * W
    bf = lambda a: a.astype(jnp.bfloat16).astype(jnp.float32)

    if feat_s.shape[2:] != (H, W):
        feat_up = jax.image.resize(feat_s, (B, feat_s.shape[1], H, W),
                                   method="bilinear")
    else:
        feat_up = feat_s

    xl = feat_l.reshape(B, Cin, HW)
    up = feat_up.reshape(B, Cout, HW)

    # FeatureSelectionModule
    xm = jnp.mean(xl, axis=2)
    atten = jax.nn.sigmoid(xm @ params["w_atten"].T)
    wfsm_b = bf(params["w_fsm"][None, :, :] * (1.0 + atten)[:, None, :])
    arm = jnp.einsum("boc,bcp->bop", wfsm_b, bf(xl), precision=HIGHEST)
    arm_bf = bf(arm)

    # offset = Conv1x1(cat([feat_arm, 2 * feat_up]))
    w1 = bf(params["w_off"][:, :Cout])
    w2s = bf(2.0 * params["w_off"][:, Cout:])
    off = (jnp.einsum("oc,bcp->bop", w1, arm_bf, precision=HIGHEST)
           + jnp.einsum("oc,bcp->bop", w2s, bf(up), precision=HIGHEST))
    off_sp = off.reshape(B, Cout, H, W)

    # DeformConv2D.p_conv: ordinary 3x3 conv, padding 1, bias
    doff = jax.lax.conv_general_dilated(
        bf(off_sp), bf(params["w_pconv"]), (1, 1), ((1, 1), (1, 1)),
        dimension_numbers=("NCHW", "OIHW", "NCHW"), precision=HIGHEST)
    doff = doff + params["b_pconv"][None, :, None, None]

    # bilinear sampling + 3x3 projection + relu + residual
    cols = _deform_sample_ref(off_sp, doff, ks=3)              # (B*HW, Cout*9)
    wd = bf(params["w_dconv"].reshape(Cout, Cout * 9))
    feat_align = jnp.maximum(
        jnp.dot(bf(cols), wd.T, precision=HIGHEST), 0.0)       # (B*HW, Cout)
    arm_rows = jnp.transpose(arm_bf, (0, 2, 1)).reshape(B * HW, Cout)
    out = feat_align + arm_rows
    return jnp.transpose(out.reshape(B, H, W, Cout), (0, 3, 1, 2))


# ---------------------------------------------------------------------------

if __name__ == "__main__":
    in_nc, out_nc, B, H, W = 16, 8, 2, 16, 16
    key = jax.random.PRNGKey(0)
    kp, kl, ks_ = jax.random.split(key, 3)

    params = init_params(kp, in_nc, out_nc)
    feat_l = jax.random.normal(kl, (B, in_nc, H, W), jnp.float32)
    feat_s = jax.random.normal(ks_, (B, out_nc, H, W), jnp.float32)

    out = jax.block_until_ready(
        jax.jit(feature_align_pallas)(params, feat_l, feat_s))
    ref = jax.block_until_ready(reference_forward(params, feat_l, feat_s))

    assert out.shape == (B, out_nc, H, W)
    max_err = float(jnp.max(jnp.abs(out - ref)))
    assert max_err < 2e-2, f"max abs error too large: {max_err}"
    print("KERNEL_OK")
</pallas_src>

<mosaic_0001>
module attributes {stable_mosaic.version = 11 : i64} {
  func.func @_fsm_offset_kernel(%arg0: i32, %arg1: i32, %arg2: memref<1x16x256xbf16, #tpu.memory_space<vmem>>, %arg3: memref<1x8x256xbf16, #tpu.memory_space<vmem>>, %arg4: memref<1x8x16xbf16, #tpu.memory_space<vmem>>, %arg5: memref<8x8xbf16, #tpu.memory_space<vmem>>, %arg6: memref<8x8xbf16, #tpu.memory_space<vmem>>, %arg7: memref<1x8x256xbf16, #tpu.memory_space<vmem>>, %arg8: memref<1x8x256xf32, #tpu.memory_space<vmem>>) attributes {dimension_semantics = [#tpu.dimension_semantics<parallel>, #tpu.dimension_semantics<parallel>], iteration_bounds = array<i64: 2, 1>, scalar_prefetch = 0 : i64, scratch_operands = 0 : i64, tpu.core_type = #tpu.core_type<tc>, window_params = [{transform_indices = @transform_0, window_bounds = array<i64: 1, 16, 256>}, {transform_indices = @transform_1, window_bounds = array<i64: 1, 8, 256>}, {transform_indices = @transform_2, window_bounds = array<i64: 1, 8, 16>}, {pipeline_mode = #tpu.pipeline_mode<synchronous>, transform_indices = @transform_3, window_bounds = array<i64: 8, 8>}, {pipeline_mode = #tpu.pipeline_mode<synchronous>, transform_indices = @transform_4, window_bounds = array<i64: 8, 8>}, {transform_indices = @transform_5, window_bounds = array<i64: 1, 8, 256>}, {transform_indices = @transform_6, window_bounds = array<i64: 1, 8, 256>}]} {
    %c0 = arith.constant 0 : index
    %c0_0 = arith.constant 0 : index
    %c0_1 = arith.constant 0 : index
    %0 = vector.load %arg4[%c0, %c0_0, %c0_1] : memref<1x8x16xbf16, #tpu.memory_space<vmem>>, vector<1x8x16xbf16>
    %1 = vector.shape_cast %0 : vector<1x8x16xbf16> to vector<8x16xbf16>
    %c0_2 = arith.constant 0 : index
    %c0_3 = arith.constant 0 : index
    %c0_4 = arith.constant 0 : index
    %2 = vector.load %arg2[%c0_2, %c0_3, %c0_4] : memref<1x16x256xbf16, #tpu.memory_space<vmem>>, vector<1x16x256xbf16>
    %3 = vector.shape_cast %2 : vector<1x16x256xbf16> to vector<16x256xbf16>
    %cst = arith.constant dense<0.000000e+00> : vector<8x256xf32>
    %4 = tpu.matmul %1, %3, %cst {dimension_numbers = #tpu.dot_dimension_numbers<[1], [0], [0], [1], [0, 0, 1, 1], [], []>} : vector<8x16xbf16>, vector<16x256xbf16>, vector<8x256xf32> -> vector<8x256xf32>
    %5 = arith.truncf %4 : vector<8x256xf32> to vector<8x256xbf16>
    %c0_5 = arith.constant 0 : index
    %c0_6 = arith.constant 0 : index
    %c0_7 = arith.constant 0 : index
    %6 = vector.load %arg7[%c0_5, %c0_6, %c0_7] : memref<1x8x256xbf16, #tpu.memory_space<vmem>>, vector<1x8x256xbf16>
    %7 = vector.shape_cast %6 : vector<1x8x256xbf16> to vector<8x256xbf16>
    %8 = vector.shape_cast %5 : vector<8x256xbf16> to vector<1x8x256xbf16>
    tpu.vector_store %arg7[%c0_5, %c0_6, %c0_7], %8 {strides = array<i32>} : memref<1x8x256xbf16, #tpu.memory_space<vmem>>, vector<1x8x256xbf16>,
    %c0_8 = arith.constant 0 : index
    %c0_9 = arith.constant 0 : index
    %9 = vector.load %arg5[%c0_8, %c0_9] : memref<8x8xbf16, #tpu.memory_space<vmem>>, vector<8x8xbf16>
    %cst_10 = arith.constant dense<0.000000e+00> : vector<8x256xf32>
    %10 = tpu.matmul %9, %5, %cst_10 {dimension_numbers = #tpu.dot_dimension_numbers<[1], [0], [0], [1], [0, 0, 1, 1], [], []>} : vector<8x8xbf16>, vector<8x256xbf16>, vector<8x256xf32> -> vector<8x256xf32>
    %c0_11 = arith.constant 0 : index
    %c0_12 = arith.constant 0 : index
    %11 = vector.load %arg6[%c0_11, %c0_12] : memref<8x8xbf16, #tpu.memory_space<vmem>>, vector<8x8xbf16>
    %c0_13 = arith.constant 0 : index
    %c0_14 = arith.constant 0 : index
    %c0_15 = arith.constant 0 : index
    %12 = vector.load %arg3[%c0_13, %c0_14, %c0_15] : memref<1x8x256xbf16, #tpu.memory_space<vmem>>, vector<1x8x256xbf16>
    %13 = vector.shape_cast %12 : vector<1x8x256xbf16> to vector<8x256xbf16>
    %cst_16 = arith.constant dense<0.000000e+00> : vector<8x256xf32>
    %14 = tpu.matmul %11, %13, %cst_16 {dimension_numbers = #tpu.dot_dimension_numbers<[1], [0], [0], [1], [0, 0, 1, 1], [], []>} : vector<8x8xbf16>, vector<8x256xbf16>, vector<8x256xf32> -> vector<8x256xf32>
    %15 = arith.addf %10, %14 : vector<8x256xf32>
    %c0_17 = arith.constant 0 : index
    %c0_18 = arith.constant 0 : index
    %c0_19 = arith.constant 0 : index
    %16 = vector.load %arg8[%c0_17, %c0_18, %c0_19] : memref<1x8x256xf32, #tpu.memory_space<vmem>>, vector<1x8x256xf32>
    %17 = vector.shape_cast %16 : vector<1x8x256xf32> to vector<8x256xf32>
    %18 = vector.shape_cast %15 : vector<8x256xf32> to vector<1x8x256xf32>
    tpu.vector_store %arg8[%c0_17, %c0_18, %c0_19], %18 {strides = array<i32>} : memref<1x8x256xf32, #tpu.memory_space<vmem>>, vector<1x8x256xf32>,
    return
  }
  func.func @transform_0(%arg0: i32, %arg1: i32) -> (i32, i32, i32) {
    %c0_i32 = arith.constant 0 : i32
    %c0_i32_0 = arith.constant 0 : i32
    return %arg0, %c0_i32, %arg1 : i32, i32, i32
  }
  func.func @transform_1(%arg0: i32, %arg1: i32) -> (i32, i32, i32) {
    %c0_i32 = arith.constant 0 : i32
    %c0_i32_0 = arith.constant 0 : i32
    return %arg0, %c0_i32, %arg1 : i32, i32, i32
  }
  func.func @transform_2(%arg0: i32, %arg1: i32) -> (i32, i32, i32) {
    %c0_i32 = arith.constant 0 : i32
    %c0_i32_0 = arith.constant 0 : i32
    %c0_i32_1 = arith.constant 0 : i32
    return %arg0, %c0_i32, %c0_i32_0 : i32, i32, i32
  }
  func.func @transform_3(%arg0: i32, %arg1: i32) -> (i32, i32) {
    %c0_i32 = arith.constant 0 : i32
    %c0_i32_0 = arith.constant 0 : i32
    %c0_i32_1 = arith.constant 0 : i32
    return %c0_i32, %c0_i32_0 : i32, i32
  }
  func.func @transform_4(%arg0: i32, %arg1: i32) -> (i32, i32) {
    %c0_i32 = arith.constant 0 : i32
    %c0_i32_0 = arith.constant 0 : i32
    %c0_i32_1 = arith.constant 0 : i32
    return %c0_i32, %c0_i32_0 : i32, i32
  }
  func.func @transform_5(%arg0: i32, %arg1: i32) -> (i32, i32, i32) {
    %c0_i32 = arith.constant 0 : i32
    %c0_i32_0 = arith.constant 0 : i32
    return %arg0, %c0_i32, %arg1 : i32, i32, i32
  }
  func.func @transform_6(%arg0: i32, %arg1: i32) -> (i32, i32, i32) {
    %c0_i32 = arith.constant 0 : i32
    %c0_i32_0 = arith.constant 0 : i32
    return %arg0, %c0_i32, %arg1 : i32, i32, i32
  }
}

module attributes {stable_mosaic.version = 11 : i64} {
  func.func @_pconv3x3_kernel(%arg0: i32, %arg1: memref<1x8x256xf32, #tpu.memory_space<vmem>>, %arg2: memref<9x18x8xbf16, #tpu.memory_space<vmem>>, %arg3: memref<9x1x256xf32, #tpu.memory_space<vmem>>, %arg4: memref<18x1xf32, #tpu.memory_space<vmem>>, %arg5: memref<1x18x256xf32, #tpu.memory_space<vmem>>) attributes {dimension_semantics = [#tpu.dimension_semantics<parallel>], iteration_bounds = array<i64: 2>, scalar_prefetch = 0 : i64, scratch_operands = 0 : i64, tpu.core_type = #tpu.core_type<tc>, window_params = [{transform_indices = @transform_0, window_bounds = array<i64: 1, 8, 256>}, {pipeline_mode = #tpu.pipeline_mode<synchronous>, transform_indices = @transform_1, window_bounds = array<i64: 9, 18, 8>}, {pipeline_mode = #tpu.pipeline_mode<synchronous>, transform_indices = @transform_2, window_bounds = array<i64: 9, 1, 256>}, {pipeline_mode = #tpu.pipeline_mode<synchronous>, transform_indices = @transform_3, window_bounds = array<i64: 18, 1>}, {transform_indices = @transform_4, window_bounds = array<i64: 1, 18, 256>}]} {
    %c0 = arith.constant 0 : index
    %c0_0 = arith.constant 0 : index
    %c0_1 = arith.constant 0 : index
    %0 = vector.load %arg1[%c0, %c0_0, %c0_1] : memref<1x8x256xf32, #tpu.memory_space<vmem>>, vector<1x8x256xf32>
    %1 = vector.shape_cast %0 : vector<1x8x256xf32> to vector<8x256xf32>
    %cst = arith.constant 0.000000e+00 : f32
    %2 = vector.broadcast %cst : f32 to vector<18x256xf32>
    %3 = vector.extract_strided_slice %1 {offsets = [0, 239], sizes = [8, 17], strides = [1, 1]} : vector<8x256xf32> to vector<8x17xf32>
    %4 = vector.extract_strided_slice %1 {offsets = [0, 0], sizes = [8, 239], strides = [1, 1]} : vector<8x256xf32> to vector<8x239xf32>
    %5 = tpu.concatenate %3, %4 in 1 : vector<8x17xf32>, vector<8x239xf32> -> vector<8x256xf32>
    %c0_2 = arith.constant 0 : index
    %c0_3 = arith.constant 0 : index
    %c0_4 = arith.constant 0 : index
    %6 = vector.load %arg3[%c0_2, %c0_3, %c0_4] : memref<9x1x256xf32, #tpu.memory_space<vmem>>, vector<1x1x256xf32>
    %7 = vector.shape_cast %6 : vector<1x1x256xf32> to vector<1x256xf32>
    %8 = vector.broadcast %7 : vector<1x256xf32> to vector<8x256xf32>
    %9 = arith.mulf %5, %8 : vector<8x256xf32>
    %10 = arith.truncf %9 : vector<8x256xf32> to vector<8x256xbf16>
    %c0_5 = arith.constant 0 : index
    %c0_6 = arith.constant 0 : index
    %c0_7 = arith.constant 0 : index
    %11 = vector.load %arg2[%c0_5, %c0_6, %c0_7] : memref<9x18x8xbf16, #tpu.memory_space<vmem>>, vector<1x18x8xbf16>
    %12 = vector.shape_cast %11 : vector<1x18x8xbf16> to vector<18x8xbf16>
    %cst_8 = arith.constant dense<0.000000e+00> : vector<18x256xf32>
    %13 = tpu.matmul %12, %10, %cst_8 {dimension_numbers = #tpu.dot_dimension_numbers<[1], [0], [0], [1], [0, 0, 1, 1], [], []>} : vector<18x8xbf16>, vector<8x256xbf16>, vector<18x256xf32> -> vector<18x256xf32>
    %14 = arith.addf %2, %13 : vector<18x256xf32>
    %15 = vector.extract_strided_slice %1 {offsets = [0, 240], sizes = [8, 16], strides = [1, 1]} : vector<8x256xf32> to vector<8x16xf32>
    %16 = vector.extract_strided_slice %1 {offsets = [0, 0], sizes = [8, 240], strides = [1, 1]} : vector<8x256xf32> to vector<8x240xf32>
    %17 = tpu.concatenate %15, %16 in 1 : vector<8x16xf32>, vector<8x240xf32> -> vector<8x256xf32>
    %c1 = arith.constant 1 : index
    %c0_9 = arith.constant 0 : index
    %c0_10 = arith.constant 0 : index
    %18 = vector.load %arg3[%c1, %c0_9, %c0_10] : memref<9x1x256xf32, #tpu.memory_space<vmem>>, vector<1x1x256xf32>
    %19 = vector.shape_cast %18 : vector<1x1x256xf32> to vector<1x256xf32>
    %20 = vector.broadcast %19 : vector<1x256xf32> to vector<8x256xf32>
    %21 = arith.mulf %17, %20 : vector<8x256xf32>
    %22 = arith.truncf %21 : vector<8x256xf32> to vector<8x256xbf16>
    %c1_11 = arith.constant 1 : index
    %c0_12 = arith.constant 0 : index
    %c0_13 = arith.constant 0 : index
    %23 = vector.load %arg2[%c1_11, %c0_12, %c0_13] : memref<9x18x8xbf16, #tpu.memory_space<vmem>>, vector<1x18x8xbf16>
    %24 = vector.shape_cast %23 : vector<1x18x8xbf16> to vector<18x8xbf16>
    %cst_14 = arith.constant dense<0.000000e+00> : vector<18x256xf32>
    %25 = tpu.matmul %24, %22, %cst_14 {dimension_numbers = #tpu.dot_dimension_numbers<[1], [0], [0], [1], [0, 0, 1, 1], [], []>} : vector<18x8xbf16>, vector<8x256xbf16>, vector<18x256xf32> -> vector<18x256xf32>
    %26 = arith.addf %14, %25 : vector<18x256xf32>
    %27 = vector.extract_strided_slice %1 {offsets = [0, 241], sizes = [8, 15], strides = [1, 1]} : vector<8x256xf32> to vector<8x15xf32>
    %28 = vector.extract_strided_slice %1 {offsets = [0, 0], sizes = [8, 241], strides = [1, 1]} : vector<8x256xf32> to vector<8x241xf32>
    %29 = tpu.concatenate %27, %28 in 1 : vector<8x15xf32>, vector<8x241xf32> -> vector<8x256xf32>
    %c2 = arith.constant 2 : index
    %c0_15 = arith.constant 0 : index
    %c0_16 = arith.constant 0 : index
    %30 = vector.load %arg3[%c2, %c0_15, %c0_16] : memref<9x1x256xf32, #tpu.memory_space<vmem>>, vector<1x1x256xf32>
    %31 = vector.shape_cast %30 : vector<1x1x256xf32> to vector<1x256xf32>
    %32 = vector.broadcast %31 : vector<1x256xf32> to vector<8x256xf32>
    %33 = arith.mulf %29, %32 : vector<8x256xf32>
    %34 = arith.truncf %33 : vector<8x256xf32> to vector<8x256xbf16>
    %c2_17 = arith.constant 2 : index
    %c0_18 = arith.constant 0 : index
    %c0_19 = arith.constant 0 : index
    %35 = vector.load %arg2[%c2_17, %c0_18, %c0_19] : memref<9x18x8xbf16, #tpu.memory_space<vmem>>, vector<1x18x8xbf16>
    %36 = vector.shape_cast %35 : vector<1x18x8xbf16> to vector<18x8xbf16>
    %cst_20 = arith.constant dense<0.000000e+00> : vector<18x256xf32>
    %37 = tpu.matmul %36, %34, %cst_20 {dimension_numbers = #tpu.dot_dimension_numbers<[1], [0], [0], [1], [0, 0, 1, 1], [], []>} : vector<18x8xbf16>, vector<8x256xbf16>, vector<18x256xf32> -> vector<18x256xf32>
    %38 = arith.addf %26, %37 : vector<18x256xf32>
    %39 = vector.extract_strided_slice %1 {offsets = [0, 255], sizes = [8, 1], strides = [1, 1]} : vector<8x256xf32> to vector<8x1xf32>
    %40 = vector.extract_strided_slice %1 {offsets = [0, 0], sizes = [8, 255], strides = [1, 1]} : vector<8x256xf32> to vector<8x255xf32>
    %41 = tpu.concatenate %39, %40 in 1 : vector<8x1xf32>, vector<8x255xf32> -> vector<8x256xf32>
    %c3 = arith.constant 3 : index
    %c0_21 = arith.constant 0 : index
    %c0_22 = arith.constant 0 : index
    %42 = vector.load %arg3[%c3, %c0_21, %c0_22] : memref<9x1x256xf32, #tpu.memory_space<vmem>>, vector<1x1x256xf32>
    %43 = vector.shape_cast %42 : vector<1x1x256xf32> to vector<1x256xf32>
    %44 = vector.broadcast %43 : vector<1x256xf32> to vector<8x256xf32>
    %45 = arith.mulf %41, %44 : vector<8x256xf32>
    %46 = arith.truncf %45 : vector<8x256xf32> to vector<8x256xbf16>
    %c3_23 = arith.constant 3 : index
    %c0_24 = arith.constant 0 : index
    %c0_25 = arith.constant 0 : index
    %47 = vector.load %arg2[%c3_23, %c0_24, %c0_25] : memref<9x18x8xbf16, #tpu.memory_space<vmem>>, vector<1x18x8xbf16>
    %48 = vector.shape_cast %47 : vector<1x18x8xbf16> to vector<18x8xbf16>
    %cst_26 = arith.constant dense<0.000000e+00> : vector<18x256xf32>
    %49 = tpu.matmul %48, %46, %cst_26 {dimension_numbers = #tpu.dot_dimension_numbers<[1], [0], [0], [1], [0, 0, 1, 1], [], []>} : vector<18x8xbf16>, vector<8x256xbf16>, vector<18x256xf32> -> vector<18x256xf32>
    %50 = arith.addf %38, %49 : vector<18x256xf32>
    %c4 = arith.constant 4 : index
    %c0_27 = arith.constant 0 : index
    %c0_28 = arith.constant 0 : index
    %51 = vector.load %arg3[%c4, %c0_27, %c0_28] : memref<9x1x256xf32, #tpu.memory_space<vmem>>, vector<1x1x256xf32>
    %52 = vector.shape_cast %51 : vector<1x1x256xf32> to vector<1x256xf32>
    %53 = vector.broadcast %52 : vector<1x256xf32> to vector<8x256xf32>
    %54 = arith.mulf %1, %53 : vector<8x256xf32>
    %55 = arith.truncf %54 : vector<8x256xf32> to vector<8x256xbf16>
    %c4_29 = arith.constant 4 : index
    %c0_30 = arith.constant 0 : index
    %c0_31 = arith.constant 0 : index
    %56 = vector.load %arg2[%c4_29, %c0_30, %c0_31] : memref<9x18x8xbf16, #tpu.memory_space<vmem>>, vector<1x18x8xbf16>
    %57 = vector.shape_cast %56 : vector<1x18x8xbf16> to vector<18x8xbf16>
    %cst_32 = arith.constant dense<0.000000e+00> : vector<18x256xf32>
    %58 = tpu.matmul %57, %55, %cst_32 {dimension_numbers = #tpu.dot_dimension_numbers<[1], [0], [0], [1], [0, 0, 1, 1], [], []>} : vector<18x8xbf16>, vector<8x256xbf16>, vector<18x256xf32> -> vector<18x256xf32>
    %59 = arith.addf %50, %58 : vector<18x256xf32>
    %60 = vector.extract_strided_slice %1 {offsets = [0, 1], sizes = [8, 255], strides = [1, 1]} : vector<8x256xf32> to vector<8x255xf32>
    %61 = vector.extract_strided_slice %1 {offsets = [0, 0], sizes = [8, 1], strides = [1, 1]} : vector<8x256xf32> to vector<8x1xf32>
    %62 = tpu.concatenate %60, %61 in 1 : vector<8x255xf32>, vector<8x1xf32> -> vector<8x256xf32>
    %c5 = arith.constant 5 : index
    %c0_33 = arith.constant 0 : index
    %c0_34 = arith.constant 0 : index
    %63 = vector.load %arg3[%c5, %c0_33, %c0_34] : memref<9x1x256xf32, #tpu.memory_space<vmem>>, vector<1x1x256xf32>
    %64 = vector.shape_cast %63 : vector<1x1x256xf32> to vector<1x256xf32>
    %65 = vector.broadcast %64 : vector<1x256xf32> to vector<8x256xf32>
    %66 = arith.mulf %62, %65 : vector<8x256xf32>
    %67 = arith.truncf %66 : vector<8x256xf32> to vector<8x256xbf16>
    %c5_35 = arith.constant 5 : index
    %c0_36 = arith.constant 0 : index
    %c0_37 = arith.constant 0 : index
    %68 = vector.load %arg2[%c5_35, %c0_36, %c0_37] : memref<9x18x8xbf16, #tpu.memory_space<vmem>>, vector<1x18x8xbf16>
    %69 = vector.shape_cast %68 : vector<1x18x8xbf16> to vector<18x8xbf16>
    %cst_38 = arith.constant dense<0.000000e+00> : vector<18x256xf32>
    %70 = tpu.matmul %69, %67, %cst_38 {dimension_numbers = #tpu.dot_dimension_numbers<[1], [0], [0], [1], [0, 0, 1, 1], [], []>} : vector<18x8xbf16>, vector<8x256xbf16>, vector<18x256xf32> -> vector<18x256xf32>
    %71 = arith.addf %59, %70 : vector<18x256xf32>
    %72 = vector.extract_strided_slice %1 {offsets = [0, 15], sizes = [8, 241], strides = [1, 1]} : vector<8x256xf32> to vector<8x241xf32>
    %73 = vector.extract_strided_slice %1 {offsets = [0, 0], sizes = [8, 15], strides = [1, 1]} : vector<8x256xf32> to vector<8x15xf32>
    %74 = tpu.concatenate %72, %73 in 1 : vector<8x241xf32>, vector<8x15xf32> -> vector<8x256xf32>
    %c6 = arith.constant 6 : index
    %c0_39 = arith.constant 0 : index
    %c0_40 = arith.constant 0 : index
    %75 = vector.load %arg3[%c6, %c0_39, %c0_40] : memref<9x1x256xf32, #tpu.memory_space<vmem>>, vector<1x1x256xf32>
    %76 = vector.shape_cast %75 : vector<1x1x256xf32> to vector<1x256xf32>
    %77 = vector.broadcast %76 : vector<1x256xf32> to vector<8x256xf32>
    %78 = arith.mulf %74, %77 : vector<8x256xf32>
    %79 = arith.truncf %78 : vector<8x256xf32> to vector<8x256xbf16>
    %c6_41 = arith.constant 6 : index
    %c0_42 = arith.constant 0 : index
    %c0_43 = arith.constant 0 : index
    %80 = vector.load %arg2[%c6_41, %c0_42, %c0_43] : memref<9x18x8xbf16, #tpu.memory_space<vmem>>, vector<1x18x8xbf16>
    %81 = vector.shape_cast %80 : vector<1x18x8xbf16> to vector<18x8xbf16>
    %cst_44 = arith.constant dense<0.000000e+00> : vector<18x256xf32>
    %82 = tpu.matmul %81, %79, %cst_44 {dimension_numbers = #tpu.dot_dimension_numbers<[1], [0], [0], [1], [0, 0, 1, 1], [], []>} : vector<18x8xbf16>, vector<8x256xbf16>, vector<18x256xf32> -> vector<18x256xf32>
    %83 = arith.addf %71, %82 : vector<18x256xf32>
    %84 = vector.extract_strided_slice %1 {offsets = [0, 16], sizes = [8, 240], strides = [1, 1]} : vector<8x256xf32> to vector<8x240xf32>
    %85 = vector.extract_strided_slice %1 {offsets = [0, 0], sizes = [8, 16], strides = [1, 1]} : vector<8x256xf32> to vector<8x16xf32>
    %86 = tpu.concatenate %84, %85 in 1 : vector<8x240xf32>, vector<8x16xf32> -> vector<8x256xf32>
    %c7 = arith.constant 7 : index
    %c0_45 = arith.constant 0 : index
    %c0_46 = arith.constant 0 : index
    %87 = vector.load %arg3[%c7, %c0_45, %c0_46] : memref<9x1x256xf32, #tpu.memory_space<vmem>>, vector<1x1x256xf32>
    %88 = vector.shape_cast %87 : vector<1x1x256xf32> to vector<1x256xf32>
    %89 = vector.broadcast %88 : vector<1x256xf32> to vector<8x256xf32>
    %90 = arith.mulf %86, %89 : vector<8x256xf32>
    %91 = arith.truncf %90 : vector<8x256xf32> to vector<8x256xbf16>
    %c7_47 = arith.constant 7 : index
    %c0_48 = arith.constant 0 : index
    %c0_49 = arith.constant 0 : index
    %92 = vector.load %arg2[%c7_47, %c0_48, %c0_49] : memref<9x18x8xbf16, #tpu.memory_space<vmem>>, vector<1x18x8xbf16>
    %93 = vector.shape_cast %92 : vector<1x18x8xbf16> to vector<18x8xbf16>
    %cst_50 = arith.constant dense<0.000000e+00> : vector<18x256xf32>
    %94 = tpu.matmul %93, %91, %cst_50 {dimension_numbers = #tpu.dot_dimension_numbers<[1], [0], [0], [1], [0, 0, 1, 1], [], []>} : vector<18x8xbf16>, vector<8x256xbf16>, vector<18x256xf32> -> vector<18x256xf32>
    %95 = arith.addf %83, %94 : vector<18x256xf32>
    %96 = vector.extract_strided_slice %1 {offsets = [0, 17], sizes = [8, 239], strides = [1, 1]} : vector<8x256xf32> to vector<8x239xf32>
    %97 = vector.extract_strided_slice %1 {offsets = [0, 0], sizes = [8, 17], strides = [1, 1]} : vector<8x256xf32> to vector<8x17xf32>
    %98 = tpu.concatenate %96, %97 in 1 : vector<8x239xf32>, vector<8x17xf32> -> vector<8x256xf32>
    %c8 = arith.constant 8 : index
    %c0_51 = arith.constant 0 : index
    %c0_52 = arith.constant 0 : index
    %99 = vector.load %arg3[%c8, %c0_51, %c0_52] : memref<9x1x256xf32, #tpu.memory_space<vmem>>, vector<1x1x256xf32>
    %100 = vector.shape_cast %99 : vector<1x1x256xf32> to vector<1x256xf32>
    %101 = vector.broadcast %100 : vector<1x256xf32> to vector<8x256xf32>
    %102 = arith.mulf %98, %101 : vector<8x256xf32>
    %103 = arith.truncf %102 : vector<8x256xf32> to vector<8x256xbf16>
    %c8_53 = arith.constant 8 : index
    %c0_54 = arith.constant 0 : index
    %c0_55 = arith.constant 0 : index
    %104 = vector.load %arg2[%c8_53, %c0_54, %c0_55] : memref<9x18x8xbf16, #tpu.memory_space<vmem>>, vector<1x18x8xbf16>
    %105 = vector.shape_cast %104 : vector<1x18x8xbf16> to vector<18x8xbf16>
    %cst_56 = arith.constant dense<0.000000e+00> : vector<18x256xf32>
    %106 = tpu.matmul %105, %103, %cst_56 {dimension_numbers = #tpu.dot_dimension_numbers<[1], [0], [0], [1], [0, 0, 1, 1], [], []>} : vector<18x8xbf16>, vector<8x256xbf16>, vector<18x256xf32> -> vector<18x256xf32>
    %107 = arith.addf %95, %106 : vector<18x256xf32>
    %c0_57 = arith.constant 0 : index
    %c0_58 = arith.constant 0 : index
    %108 = vector.load %arg4[%c0_57, %c0_58] : memref<18x1xf32, #tpu.memory_space<vmem>>, vector<18x1xf32>
    %109 = vector.broadcast %108 : vector<18x1xf32> to vector<18x256xf32>
    %110 = arith.addf %107, %109 : vector<18x256xf32>
    %c0_59 = arith.constant 0 : index
    %c0_60 = arith.constant 0 : index
    %c0_61 = arith.constant 0 : index
    %111 = vector.load %arg5[%c0_59, %c0_60, %c0_61] : memref<1x18x256xf32, #tpu.memory_space<vmem>>, vector<1x18x256xf32>
    %112 = vector.shape_cast %111 : vector<1x18x256xf32> to vector<18x256xf32>
    %113 = vector.shape_cast %110 : vector<18x256xf32> to vector<1x18x256xf32>
    tpu.vector_store %arg5[%c0_59, %c0_60, %c0_61], %113 {strides = array<i32>} : memref<1x18x256xf32, #tpu.memory_space<vmem>>, vector<1x18x256xf32>,
    return
  }
  func.func @transform_0(%arg0: i32) -> (i32, i32, i32) {
    %c0_i32 = arith.constant 0 : i32
    %c0_i32_0 = arith.constant 0 : i32
    %c0_i32_1 = arith.constant 0 : i32
    return %arg0, %c0_i32, %c0_i32_0 : i32, i32, i32
  }
  func.func @transform_1(%arg0: i32) -> (i32, i32, i32) {
    %c0_i32 = arith.constant 0 : i32
    %c0_i32_0 = arith.constant 0 : i32
    %c0_i32_1 = arith.constant 0 : i32
    %c0_i32_2 = arith.constant 0 : i32
    return %c0_i32, %c0_i32_0, %c0_i32_1 : i32, i32, i32
  }
  func.func @transform_2(%arg0: i32) -> (i32, i32, i32) {
    %c0_i32 = arith.constant 0 : i32
    %c0_i32_0 = arith.constant 0 : i32
    %c0_i32_1 = arith.constant 0 : i32
    %c0_i32_2 = arith.constant 0 : i32
    return %c0_i32, %c0_i32_0, %c0_i32_1 : i32, i32, i32
  }
  func.func @transform_3(%arg0: i32) -> (i32, i32) {
    %c0_i32 = arith.constant 0 : i32
    %c0_i32_0 = arith.constant 0 : i32
    %c0_i32_1 = arith.constant 0 : i32
    return %c0_i32, %c0_i32_0 : i32, i32
  }
  func.func @transform_4(%arg0: i32) -> (i32, i32, i32) {
    %c0_i32 = arith.constant 0 : i32
    %c0_i32_0 = arith.constant 0 : i32
    %c0_i32_1 = arith.constant 0 : i32
    return %arg0, %c0_i32, %c0_i32_0 : i32, i32, i32
  }
}

module attributes {stable_mosaic.version = 11 : i64} {
  func.func @_deform_proj_kernel(%arg0: i32, %arg1: i32, %arg2: memref<1x72x256xbf16, #tpu.memory_space<vmem>>, %arg3: memref<8x72xbf16, #tpu.memory_space<vmem>>, %arg4: memref<1x8x256xbf16, #tpu.memory_space<vmem>>, %arg5: memref<1x8x256xf32, #tpu.memory_space<vmem>>) attributes {dimension_semantics = [#tpu.dimension_semantics<parallel>, #tpu.dimension_semantics<parallel>], iteration_bounds = array<i64: 2, 1>, scalar_prefetch = 0 : i64, scratch_operands = 0 : i64, tpu.core_type = #tpu.core_type<tc>, window_params = [{transform_indices = @transform_0, window_bounds = array<i64: 1, 72, 256>}, {pipeline_mode = #tpu.pipeline_mode<synchronous>, transform_indices = @transform_1, window_bounds = array<i64: 8, 72>}, {transform_indices = @transform_2, window_bounds = array<i64: 1, 8, 256>}, {transform_indices = @transform_3, window_bounds = array<i64: 1, 8, 256>}]} {
    %c0 = arith.constant 0 : index
    %c0_0 = arith.constant 0 : index
    %0 = vector.load %arg3[%c0, %c0_0] : memref<8x72xbf16, #tpu.memory_space<vmem>>, vector<8x72xbf16>
    %c0_1 = arith.constant 0 : index
    %c0_2 = arith.constant 0 : index
    %c0_3 = arith.constant 0 : index
    %1 = vector.load %arg2[%c0_1, %c0_2, %c0_3] : memref<1x72x256xbf16, #tpu.memory_space<vmem>>, vector<1x72x256xbf16>
    %2 = vector.shape_cast %1 : vector<1x72x256xbf16> to vector<72x256xbf16>
    %cst = arith.constant dense<0.000000e+00> : vector<8x256xf32>
    %3 = tpu.matmul %0, %2, %cst {dimension_numbers = #tpu.dot_dimension_numbers<[1], [0], [0], [1], [0, 0, 1, 1], [], []>} : vector<8x72xbf16>, vector<72x256xbf16>, vector<8x256xf32> -> vector<8x256xf32>
    %cst_4 = arith.constant 0.000000e+00 : f32
    %4 = vector.broadcast %cst_4 : f32 to vector<8x256xf32>
    %5 = arith.maximumf %3, %4 : vector<8x256xf32>
    %c0_5 = arith.constant 0 : index
    %c0_6 = arith.constant 0 : index
    %c0_7 = arith.constant 0 : index
    %6 = vector.load %arg4[%c0_5, %c0_6, %c0_7] : memref<1x8x256xbf16, #tpu.memory_space<vmem>>, vector<1x8x256xbf16>
    %7 = vector.shape_cast %6 : vector<1x8x256xbf16> to vector<8x256xbf16>
    %8 = arith.extf %7 : vector<8x256xbf16> to vector<8x256xf32>
    %9 = arith.addf %5, %8 : vector<8x256xf32>
    %c0_8 = arith.constant 0 : index
    %c0_9 = arith.constant 0 : index
    %c0_10 = arith.constant 0 : index
    %10 = vector.load %arg5[%c0_8, %c0_9, %c0_10] : memref<1x8x256xf32, #tpu.memory_space<vmem>>, vector<1x8x256xf32>
    %11 = vector.shape_cast %10 : vector<1x8x256xf32> to vector<8x256xf32>
    %12 = vector.shape_cast %9 : vector<8x256xf32> to vector<1x8x256xf32>
    tpu.vector_store %arg5[%c0_8, %c0_9, %c0_10], %12 {strides = array<i32>} : memref<1x8x256xf32, #tpu.memory_space<vmem>>, vector<1x8x256xf32>,
    return
  }
  func.func @transform_0(%arg0: i32, %arg1: i32) -> (i32, i32, i32) {
    %c0_i32 = arith.constant 0 : i32
    %c0_i32_0 = arith.constant 0 : i32
    return %arg0, %c0_i32, %arg1 : i32, i32, i32
  }
  func.func @transform_1(%arg0: i32, %arg1: i32) -> (i32, i32) {
    %c0_i32 = arith.constant 0 : i32
    %c0_i32_0 = arith.constant 0 : i32
    %c0_i32_1 = arith.constant 0 : i32
    return %c0_i32, %c0_i32_0 : i32, i32
  }
  func.func @transform_2(%arg0: i32, %arg1: i32) -> (i32, i32, i32) {
    %c0_i32 = arith.constant 0 : i32
    %c0_i32_0 = arith.constant 0 : i32
    return %arg0, %c0_i32, %arg1 : i32, i32, i32
  }
  func.func @transform_3(%arg0: i32, %arg1: i32) -> (i32, i32, i32) {
    %c0_i32 = arith.constant 0 : i32
    %c0_i32_0 = arith.constant 0 : i32
    return %arg0, %c0_i32, %arg1 : i32, i32, i32
  }
}

</mosaic_0001>

<llo_original>
// kernel: tile.8
$region0: #{tile.8}
  #allocation0 [shape = 's32[1]{0}', space=sflag, size = 0x4, scoped, tag = 'scoped memory for tile.8']
  %s0 = inlined_call_operand.vmem [shape: f32[3], index: 0, kind: input, shape index: {}]
  %s1 = inlined_call_operand.vmem [shape: f32[3,3], index: 1, kind: output, shape index: {}]
  // Predicated region
  $region2: #{tile.8} parent=0 // pred_check
    _
  $region3: #{tile.8} parent=0 // pred_check_branch
    %3 = sbr.rel (0) target = $region5
  $region4: #{tile.8} parent=0 // pred_region
    _
  $region5: #{tile.8} parent=0 // pred_fallthru
    _
  %v4 = vld [vmem:[%s0] ss:$0 sm:$0xff]
  %5 = vst [vmem:[%s1] sm:$0xf] %v4

// kernel: feature_align_pallas.3
$region0: #{feature_align_pallas.3}
  #allocation0 [shape = 'u32[]', space=smem, size = 0x4, offset = 0x4, fixed_abs, tag = 'smem constant byte address 0x4 - core index']
  #allocation1 [shape = 'u32[144,128]{1,0:T(1,128)}', space=vmem, size = 0x12000, scoped, tag = 'internal scratch']
  %s0 = inlined_call_operand.vmem [shape: bf16[2,16,256], index: 0, kind: input, shape index: {}]
  %s1 = inlined_call_operand.vmem [shape: bf16[2,8,256], index: 1, kind: input, shape index: {}]
  %s2 = inlined_call_operand.vmem [shape: bf16[2,8,16], index: 2, kind: input, shape index: {}]
  %s3 = inlined_call_operand.vmem [shape: bf16[8,8], index: 3, kind: input, shape index: {}]
  %s4 = inlined_call_operand.vmem [shape: bf16[8,8], index: 4, kind: input, shape index: {}]
  %s5 = inlined_call_operand.vmem [shape: bf16[2,8,256], index: 5, kind: output, shape index: {0}]
  %s6 = inlined_call_operand.vmem [shape: f32[2,8,256], index: 6, kind: output, shape index: {1}]
  %7 = xla_tuple %s5, %s6
  %s8 = sld [smem:[#allocation0]]
  $region61: #{feature_align_pallas.3} parent=0
    _
  %s10 = ssub.s32 1, %s8
  %s11 = scalar_select 0, %s10, %s8
  loop: start=0, step=1, limit=4
  $region2: #{feature_align_pallas.3} parent=0 // loop_pre_header
    _
  $region3: #{feature_align_pallas.3} parent=0 // loop_header
    %s13 = sphi 0, %s17
    %p14 = scmp.ge.s32.totalorder %s13, 4
    %s20 = sphi 0, %s32
    %s21 = sphi 0, %s28
    %s22 = sphi 0, %s20
    %s23 = sphi 0, %s21
    %s24 = sphi 0, %s22
    %s25 = sphi 0, %s23
    %s37 = sphi 0, %s39
    %s40 = sphi 0, %s37
    %s41 = sphi 0, %s40
    %s57 = sphi 0, %s41
    %s65 = sphi 0, %s67
    %s68 = sphi 0, %s65
    %s69 = sphi 0, %s68
    %s85 = sphi 0, %s69
    %s91 = sphi 0, %s93
    %s94 = sphi 0, %s91
    %s95 = sphi 0, %s94
    %s111 = sphi 0, %s95
    %s115 = sphi 0, %s115
    %s117 = sphi 0, %s115
    %s118 = sphi 0, %s117
    %s132 = sphi 0, %s118
    %s136 = sphi 0, %s136
    %s138 = sphi 0, %s136
    %s139 = sphi 0, %s138
    %s153 = sphi 0, %s139
    %s161 = sphi 0, %s163
    %s164 = sphi 0, %s161
    %s165 = sphi 0, %s164
    %s181 = sphi 0, %s165
    %s189 = sphi 0, %s191
    %s192 = sphi 0, %s189
    %s193 = sphi 0, %s192
    %s209 = sphi 0, %s193
  $region4: #{feature_align_pallas.3} parent=0 // loop_header_branch
    %16 = sbr.rel (%p14) target = $region8
  $region5: #{feature_align_pallas.3} parent=0 // loop_body
    %s18 = ssub.s32 %s13, 1
    %s19 = ssub.s32 %s13, 2
    %s26 = sadd.s32 1, %s21
    %p27 = scmp.ge.s32.totalorder %s26, 1
    %s28 = scalar_select %p27, 0, %s26
    %s29 = sadd.s32 1, %s20
    %s30 = scalar_select %p27, %s29, %s20
    %p31 = scmp.ge.s32.totalorder %s30, 2
    %s32 = scalar_select %p31, 0, %s30
    %s33 = ssub.s32 %s20, %s32
    %s34 = ssub.s32 %s21, %s28
    %s35 = sor.u32 %s33, %s34
    %p36 = scmp.eq.s32.totalorder %s35, 0
    %s38 = sadd.s32 %s37, 1
    %s39 = scalar_select %p36, %s37, %s38
    %p42 = pneg %p36
    %p43 = scmp.eq.s32.totalorder %s13, 1
    %p44 = por %p42, %p43
    %p45 = scmp.ne.s32.totalorder %s37, %s40
    %p46 = scmp.eq.s32.totalorder %s13, 0
    %p47 = por %p45, %p46
    %p48 = scmp.ne.s32.totalorder %s37, %s40
    %p49 = scmp.eq.s32.totalorder %s18, 1
    %p50 = por %p48, %p49
    %p51 = scmp.ne.s32.totalorder %s40, %s41
    %p52 = scmp.eq.s32.totalorder %s18, 0
    %p53 = por %p51, %p52
    %p54 = scmp.ne.s32.totalorder %s40, %s41
    %p55 = scmp.eq.s32.totalorder %s19, 1
    %p56 = por %p54, %p55
    %p58 = scmp.ne.s32.totalorder %s41, %s57
    %p59 = scmp.eq.s32.totalorder %s19, 0
    %p60 = por %p58, %p59
    %s61 = ssub.s32 %s20, %s32
    %s62 = ssub.s32 %s21, %s28
    %s63 = sor.u32 %s61, %s62
    %p64 = scmp.eq.s32.totalorder %s63, 0
    %s66 = sadd.s32 %s65, 1
    %s67 = scalar_select %p64, %s65, %s66
    %p70 = pneg %p64
    %p71 = scmp.eq.s32.totalorder %s13, 1
    %p72 = por %p70, %p71
    %p73 = scmp.ne.s32.totalorder %s65, %s68
    %p74 = scmp.eq.s32.totalorder %s13, 0
    %p75 = por %p73, %p74
    %p76 = scmp.ne.s32.totalorder %s65, %s68
    %p77 = scmp.eq.s32.totalorder %s18, 1
    %p78 = por %p76, %p77
    %p79 = scmp.ne.s32.totalorder %s68, %s69
    %p80 = scmp.eq.s32.totalorder %s18, 0
    %p81 = por %p79, %p80
    %p82 = scmp.ne.s32.totalorder %s68, %s69
    %p83 = scmp.eq.s32.totalorder %s19, 1
    %p84 = por %p82, %p83
    %p86 = scmp.ne.s32.totalorder %s69, %s85
    %p87 = scmp.eq.s32.totalorder %s19, 0
    %p88 = por %p86, %p87
    %s89 = ssub.s32 %s20, %s32
    %p90 = scmp.eq.s32.totalorder %s89, 0
    %s92 = sadd.s32 %s91, 1
    %s93 = scalar_select %p90, %s91, %s92
    %p96 = pneg %p90
    %p97 = scmp.eq.s32.totalorder %s13, 1
    %p98 = por %p96, %p97
    %p99 = scmp.ne.s32.totalorder %s91, %s94
    %p100 = scmp.eq.s32.totalorder %s13, 0
    %p101 = por %p99, %p100
    %p102 = scmp.ne.s32.totalorder %s91, %s94
    %p103 = scmp.eq.s32.totalorder %s18, 1
    %p104 = por %p102, %p103
    %p105 = scmp.ne.s32.totalorder %s94, %s95
    %p106 = scmp.eq.s32.totalorder %s18, 0
    %p107 = por %p105, %p106
    %p108 = scmp.ne.s32.totalorder %s94, %s95
    %p109 = scmp.eq.s32.totalorder %s19, 1
    %p110 = por %p108, %p109
    %p112 = scmp.ne.s32.totalorder %s95, %s111
    %p113 = scmp.eq.s32.totalorder %s19, 0
    %p114 = por %p112, %p113
    %s116 = sadd.s32 %s115, 1
    %p119 = scmp.eq.s32.totalorder %s13, 1
    %p120 = scmp.ne.s32.totalorder %s115, %s117
    %p121 = scmp.eq.s32.totalorder %s13, 0
    %p122 = por %p120, %p121
    %p123 = scmp.ne.s32.totalorder %s115, %s117
    %p124 = scmp.eq.s32.totalorder %s18, 1
    %p125 = por %p123, %p124
    %p126 = scmp.ne.s32.totalorder %s117, %s118
    %p127 = scmp.eq.s32.totalorder %s18, 0
    %p128 = por %p126, %p127
    %p129 = scmp.ne.s32.totalorder %s117, %s118
    %p130 = scmp.eq.s32.totalorder %s19, 1
    %p131 = por %p129, %p130
    %p133 = scmp.ne.s32.totalorder %s118, %s132
    %p134 = scmp.eq.s32.totalorder %s19, 0
    %p135 = por %p133, %p134
    %s137 = sadd.s32 %s136, 1
    %p140 = scmp.eq.s32.totalorder %s13, 1
    %p141 = scmp.ne.s32.totalorder %s136, %s138
    %p142 = scmp.eq.s32.totalorder %s13, 0
    %p143 = por %p141, %p142
    %p144 = scmp.ne.s32.totalorder %s136, %s138
    %p145 = scmp.eq.s32.totalorder %s18, 1
    %p146 = por %p144, %p145
    %p147 = scmp.ne.s32.totalorder %s138, %s139
    %p148 = scmp.eq.s32.totalorder %s18, 0
    %p149 = por %p147, %p148
    %p150 = scmp.ne.s32.totalorder %s138, %s139
    %p151 = scmp.eq.s32.totalorder %s19, 1
    %p152 = por %p150, %p151
    %p154 = scmp.ne.s32.totalorder %s139, %s153
    %p155 = scmp.eq.s32.totalorder %s19, 0
    %p156 = por %p154, %p155
    %s157 = ssub.s32 %s20, %s32
    %s158 = ssub.s32 %s21, %s28
    %s159 = sor.u32 %s157, %s158
    %p160 = scmp.eq.s32.totalorder %s159, 0
    %s162 = sadd.s32 %s161, 1
    %s163 = scalar_select %p160, %s161, %s162
    %p166 = pneg %p160
    %p167 = scmp.eq.s32.totalorder %s13, 1
    %p168 = por %p166, %p167
    %p169 = scmp.ne.s32.totalorder %s161, %s164
    %p170 = scmp.eq.s32.totalorder %s13, 0
    %p171 = por %p169, %p170
    %p172 = scmp.ne.s32.totalorder %s161, %s164
    %p173 = scmp.eq.s32.totalorder %s18, 1
    %p174 = por %p172, %p173
    %p175 = scmp.ne.s32.totalorder %s164, %s165
    %p176 = scmp.eq.s32.totalorder %s18, 0
    %p177 = por %p175, %p176
    %p178 = scmp.ne.s32.totalorder %s164, %s165
    %p179 = scmp.eq.s32.totalorder %s19, 1
    %p180 = por %p178, %p179
    %p182 = scmp.ne.s32.totalorder %s165, %s181
    %p183 = scmp.eq.s32.totalorder %s19, 0
    %p184 = por %p182, %p183
    %s185 = ssub.s32 %s20, %s32
    %s186 = ssub.s32 %s21, %s28
    %s187 = sor.u32 %s185, %s186
    %p188 = scmp.eq.s32.totalorder %s187, 0
    %s190 = sadd.s32 %s189, 1
    %s191 = scalar_select %p188, %s189, %s190
    %p194 = pneg %p188
    %p195 = scmp.eq.s32.totalorder %s13, 1
    %p196 = por %p194, %p195
    %p197 = scmp.ne.s32.totalorder %s189, %s192
    %p198 = scmp.eq.s32.totalorder %s13, 0
    %p199 = por %p197, %p198
    %p200 = scmp.ne.s32.totalorder %s189, %s192
    %p201 = scmp.eq.s32.totalorder %s18, 1
    %p202 = por %p200, %p201
    %p203 = scmp.ne.s32.totalorder %s192, %s193
    %p204 = scmp.eq.s32.totalorder %s18, 0
    %p205 = por %p203, %p204
    %p206 = scmp.ne.s32.totalorder %s192, %s193
    %p207 = scmp.eq.s32.totalorder %s19, 1
    %p208 = por %p206, %p207
    %p210 = scmp.ne.s32.totalorder %s193, %s209
    %p211 = scmp.eq.s32.totalorder %s19, 0
    %p212 = por %p210, %p211
    %p213 = scmp.le.s32.totalorder 1, %s13
    %p214 = scmp.lt.s32.totalorder %s13, 3
    %p215 = pnand %p213, %p214
    %p216 = pneg %p215
    // Predicated region
    $region9: #{feature_align_pallas.3} parent=5 // pred_check
      _
    $region10: #{feature_align_pallas.3} parent=5 // pred_check_branch
      %218 = sbr.rel (%p215) target = $region12
    $region11: #{feature_align_pallas.3} parent=5 // pred_region
      %s219 = ssub.s32 %s13, 1
      // Predicated region
      $region13: #{feature_align_pallas.3} parent=11 // pred_check
        %p220 = pneg %p128
      $region14: #{feature_align_pallas.3} parent=11 // pred_check_branch
        %222 = sbr.rel (%p220) target = $region16
      $region15: #{feature_align_pallas.3} parent=11 // pred_region
        _
      $region16: #{feature_align_pallas.3} parent=11 // pred_fallthru
        _
      // Predicated region
      $region17: #{feature_align_pallas.3} parent=11 // pred_check
        %p223 = pneg %p149
      $region18: #{feature_align_pallas.3} parent=11 // pred_check_branch
        %225 = sbr.rel (%p223) target = $region20
      $region19: #{feature_align_pallas.3} parent=11 // pred_region
        _
      $region20: #{feature_align_pallas.3} parent=11 // pred_fallthru
        _
    $region12: #{feature_align_pallas.3} parent=5 // pred_fallthru
      _
    %p226 = scmp.lt.s32.totalorder %s13, 2
    // Predicated region
    $region21: #{feature_align_pallas.3} parent=5 // pred_check
      %p227 = pneg %p226
    $region22: #{feature_align_pallas.3} parent=5 // pred_check_branch
      %229 = sbr.rel (%p227) target = $region24
    $region23: #{feature_align_pallas.3} parent=5 // pred_region
      // Predicated region
      $region25: #{feature_align_pallas.3} parent=23 // pred_check
        %p230 = pneg %p47
      $region26: #{feature_align_pallas.3} parent=23 // pred_check_branch
        %232 = sbr.rel (%p230) target = $region28
      $region27: #{feature_align_pallas.3} parent=23 // pred_region
        %s233 = smul.u32 2, %s21
        %p234 = scmp.lt.s32.totalorder %s20, 1
        %s235 = scalar_select %p234, %s20, 1
        %p236 = scmp.lt.s32.totalorder %s233, 1
        %s237 = scalar_select %p236, %s233, 1
        %s238 = smul.addr %s235, 4
        %s239 = sadd.s32 %s237, %s238
        %s240 = smul.addr %s239, 4
        %s241 = scalar_lea.vmem %s0, %s240
        %s242 = smul.u32 2, %s21
      $region28: #{feature_align_pallas.3} parent=23 // pred_fallthru
        _
      // Predicated region
      $region29: #{feature_align_pallas.3} parent=23 // pred_check
        %p243 = pneg %p75
      $region30: #{feature_align_pallas.3} parent=23 // pred_check_branch
        %245 = sbr.rel (%p243) target = $region32
      $region31: #{feature_align_pallas.3} parent=23 // pred_region
        %s246 = smul.u32 2, %s21
        %p247 = scmp.lt.s32.totalorder %s20, 1
        %s248 = scalar_select %p247, %s20, 1
        %p249 = scmp.lt.s32.totalorder %s246, 1
        %s250 = scalar_select %p249, %s246, 1
        %s251 = smul.addr %s248, 2
        %s252 = sadd.s32 %s250, %s251
        %s253 = smul.addr %s252, 4
        %s254 = scalar_lea.vmem %s1, %s253
        %s255 = smul.u32 2, %s21
      $region32: #{feature_align_pallas.3} parent=23 // pred_fallthru
        _
      // Predicated region
      $region33: #{feature_align_pallas.3} parent=23 // pred_check
        %p256 = pneg %p101
      $region34: #{feature_align_pallas.3} parent=23 // pred_check_branch
        %258 = sbr.rel (%p256) target = $region36
      $region35: #{feature_align_pallas.3} parent=23 // pred_region
        %p259 = scmp.lt.s32.totalorder %s20, 1
        %s260 = scalar_select %p259, %s20, 1
        %s261 = smul.addr %s260, 4
        %s262 = scalar_lea.vmem %s2, %s261
      $region36: #{feature_align_pallas.3} parent=23 // pred_fallthru
        _
    $region24: #{feature_align_pallas.3} parent=5 // pred_fallthru
      _
    %p263 = scmp.le.s32.totalorder 1, %s13
    %p264 = scmp.lt.s32.totalorder %s13, 3
    %p265 = pnand %p263, %p264
    %p266 = pneg %p265
    // Predicated region
    $region37: #{feature_align_pallas.3} parent=5 // pred_check
      _
    $region38: #{feature_align_pallas.3} parent=5 // pred_check_branch
      %268 = sbr.rel (%p265) target = $region40
    $region39: #{feature_align_pallas.3} parent=5 // pred_region
      %s269 = ssub.s32 %s13, 1
      %s270 = smul.u32 2, %s23
      %p271 = scmp.lt.s32.totalorder %s22, 1
      %s272 = scalar_select %p271, %s22, 1
      %p273 = scmp.lt.s32.totalorder %s270, 1
      %s274 = scalar_select %p273, %s270, 1
      %s275 = smul.addr %s272, 4
      %s276 = sadd.s32 %s274, %s275
      %s277 = smul.addr %s276, 4
      %s278 = scalar_lea.vmem %s0, %s277
      %p279 = pneg %p53
      %p280 = pneg %p50
      %s281 = smul.u32 2, %s23
      %p282 = scmp.lt.s32.totalorder %s22, 1
      %s283 = scalar_select %p282, %s22, 1
      %p284 = scmp.lt.s32.totalorder %s281, 1
      %s285 = scalar_select %p284, %s281, 1
      %s286 = smul.addr %s283, 2
      %s287 = sadd.s32 %s285, %s286
      %s288 = smul.addr %s287, 4
      %s289 = scalar_lea.vmem %s1, %s288
      %p290 = pneg %p81
      %p291 = pneg %p78
      %p292 = scmp.lt.s32.totalorder %s22, 1
      %s293 = scalar_select %p292, %s22, 1
      %s294 = smul.addr %s293, 4
      %s295 = scalar_lea.vmem %s2, %s294
      %p296 = pneg %p107
      %p297 = pneg %p104
      %p298 = pneg %p128
      %p299 = pneg %p125
      %p300 = pneg %p149
      %p301 = pneg %p146
      %p302 = pneg %p177
      %p303 = pneg %p174
      %s304 = smul.u32 2, %s23
      %p305 = scmp.lt.s32.totalorder %s22, 1
      %s306 = scalar_select %p305, %s22, 1
      %p307 = scmp.lt.s32.totalorder %s304, 1
      %s308 = scalar_select %p307, %s304, 1
      %s309 = smul.addr %s306, 2
      %s310 = sadd.s32 %s308, %s309
      %s311 = smul.addr %s310, 4
      %s312 = scalar_lea.vmem %s5, %s311
      %p313 = pneg %p205
      %p314 = pneg %p202
      %s315 = smul.u32 2, %s23
      %p316 = scmp.lt.s32.totalorder %s22, 1
      %s317 = scalar_select %p316, %s22, 1
      %p318 = scmp.lt.s32.totalorder %s315, 1
      %s319 = scalar_select %p318, %s315, 1
      %s320 = smul.addr %s317, 2
      %s321 = sadd.s32 %s319, %s320
      %s322 = smul.addr %s321, 8
      %s323 = scalar_lea.vmem %s6, %s322
      %s324 = smul.u32 2, %s23
      %p325 = scmp.lt.s32.totalorder %s22, 1
      %s326 = scalar_select %p325, %s22, 1
      %p327 = scmp.lt.s32.totalorder %s324, 1
      %s328 = scalar_select %p327, %s324, 1
      %s329 = smul.addr %s326, 4
      %s330 = sadd.s32 %s328, %s329
      %s331 = smul.addr %s330, 4
      %s332 = scalar_lea.vmem %s0, %s331
      %s333 = smul.u32 2, %s23
      %s334 = smul.u32 2, %s23
      %p335 = scmp.lt.s32.totalorder %s22, 1
      %s336 = scalar_select %p335, %s22, 1
      %p337 = scmp.lt.s32.totalorder %s334, 1
      %s338 = scalar_select %p337, %s334, 1
      %s339 = smul.addr %s336, 2
      %s340 = sadd.s32 %s338, %s339
      %s341 = smul.addr %s340, 4
      %s342 = scalar_lea.vmem %s1, %s341
      %s343 = smul.u32 2, %s23
      %p344 = scmp.lt.s32.totalorder %s22, 1
      %s345 = scalar_select %p344, %s22, 1
      %s346 = smul.addr %s345, 4
      %s347 = scalar_lea.vmem %s2, %s346
      %s348 = smul.u32 2, %s23
      %p349 = scmp.lt.s32.totalorder %s22, 1
      %s350 = scalar_select %p349, %s22, 1
      %p351 = scmp.lt.s32.totalorder %s348, 1
      %s352 = scalar_select %p351, %s348, 1
      %s353 = smul.addr %s350, 2
      %s354 = sadd.s32 %s352, %s353
      %s355 = smul.addr %s354, 4
      %s356 = scalar_lea.vmem %s5, %s355
      %s357 = smul.u32 2, %s23
      %s358 = smul.u32 2, %s23
      %p359 = scmp.lt.s32.totalorder %s22, 1
      %s360 = scalar_select %p359, %s22, 1
      %p361 = scmp.lt.s32.totalorder %s358, 1
      %s362 = scalar_select %p361, %s358, 1
      %s363 = smul.addr %s360, 2
      %s364 = sadd.s32 %s362, %s363
      %s365 = smul.addr %s364, 8
      %s366 = scalar_lea.vmem %s6, %s365
      %s367 = smul.u32 2, %s23
      %v369 = vld [vmem:[%s347] sm:$0xf]
      %v370 = vld [vmem:[%s332] sm:$0xff]
      %v371 = vld [vmem:[%s332 + $0x8] sm:$0xff]
      %v374 = vunpack.c.l.b16 %v370
      %v375 = vunpack.c.h.b16 %v370
      %v376 = vunpack.c.l.b16 %v371
      %v377 = vunpack.c.h.b16 %v371
      %v378 = vpack.c.b16 %v376, %v374
      %v379 = vpack.c.b16 %v377, %v375
      %vm382 = vcmask 130048
      %v384 = vsel %vm382, %v369, 0
      %386 = vmatprep.subr.bf16.mxu0 %v379
      %387 = vmatpush1.bf16.msra.mxu0 %v378
      %388 = vmatprep.subr.bf16.mxu0 0
      %389 = vmatpush1.bf16.msra.mxu0 0
      %390 = vmatprep.subr.bf16.mxu0 0
      %391 = vmatpush1.bf16.msra.mxu0 0
      %392 = vmatprep.subr.bf16.mxu0 0
      %393 = vmatpush1.bf16.msra.mxu0 0
      %394 = vmatprep.subr.bf16.mxu0 0
      %395 = vmatpush1.bf16.msra.mxu0 0
      %396 = vmatprep.subr.bf16.mxu0 0
      %397 = vmatpush1.bf16.msra.mxu0 0
      %398 = vmatprep.subr.bf16.mxu0 0
      %399 = vmatpush1.bf16.msra.mxu0 0
      %400 = vmatprep.subr.bf16.mxu0 0
      %401 = vmatpush1.bf16.msra.mxu0 0
      %402 = vmatprep.subr.bf16.mxu0 0
      %403 = vmatpush1.bf16.msra.mxu0 0
      %404 = vmatprep.subr.bf16.mxu0 0
      %405 = vmatpush1.bf16.msra.mxu0 0
      %406 = vmatprep.subr.bf16.mxu0 0
      %407 = vmatpush1.bf16.msra.mxu0 0
      %408 = vmatprep.subr.bf16.mxu0 0
      %409 = vmatpush1.bf16.msra.mxu0 0
      %410 = vmatprep.subr.bf16.mxu0 0
      %411 = vmatpush1.bf16.msra.mxu0 0
      %412 = vmatprep.subr.bf16.mxu0 0
      %413 = vmatpush1.bf16.msra.mxu0 0
      %414 = vmatprep.subr.bf16.mxu0 0
      %415 = vmatpush1.bf16.msra.mxu0 0
      %416 = vmatprep.subr.bf16.mxu0 0
      %417 = vmatpush1.bf16.msra.mxu0 0
      %418 = vmatprep.mubr.bf16.mxu0 0
      %419 = vmatmul.mubr.bf16.gmra.mrb[0].mxu0 %v384
      %v420 = vpop.f32.mrb[0].mxu0
      %v421 = vadd.f32 0.0, %v420
      %v422 = vpop.f32.mrb[0].mxu0
      %v423 = vadd.f32 0.0, %v422
      %v424 = vpop.f32.mrb[0].mxu0
      %v425 = vpop.f32.mrb[0].mxu0
      %426 = vdwg.mxu0
      %v427 = vpack.c.bf16 %v421, %v421
      %v428 = vpack.c.bf16 %v423, %v423
      %v431 = vunpack.c.l.b16 %v427
      %v432 = vunpack.c.l.b16 %v428
      %v433 = vpack.c.b16 %v432, %v431
      %435 = vst [vmem:[%s356] sm:$0xff] %v433
      %v436 = vld [vmem:[%s3] sm:$0xf]
      %v437 = vld [vmem:[%s4] sm:$0xf]
      %v438 = vld [vmem:[%s342] sm:$0xff]
      %v440 = vunpack.c.l.b16 %v438
      %v441 = vunpack.c.h.b16 %v438
      %v442 = vpack.c.b16 %v440, %v440
      %v443 = vpack.c.b16 %v441, %v441
      %vm444 = vcmask 64512
      %v446 = vsel %vm444, %v437, 0
      %vm448 = vcmask 1043456
      %v450 = vsel %vm448, %v442, 0
      %v453 = vsel %vm448, %v443, 0
      %455 = vmatprep.subr.bf16.mxu0 %v453
      %456 = vmatpush1.bf16.msra.mxu0 %v450
      %457 = vmatprep.subr.bf16.mxu0 0
      %458 = vmatpush1.bf16.msra.mxu0 0
      %459 = vmatprep.subr.bf16.mxu0 0
      %460 = vmatpush1.bf16.msra.mxu0 0
      %461 = vmatprep.subr.bf16.mxu0 0
      %462 = vmatpush1.bf16.msra.mxu0 0
      %463 = vmatprep.subr.bf16.mxu0 0
      %464 = vmatpush1.bf16.msra.mxu0 0
      %465 = vmatprep.subr.bf16.mxu0 0
      %466 = vmatpush1.bf16.msra.mxu0 0
      %467 = vmatprep.subr.bf16.mxu0 0
      %468 = vmatpush1.bf16.msra.mxu0 0
      %469 = vmatprep.subr.bf16.mxu0 0
      %470 = vmatpush1.bf16.msra.mxu0 0
      %471 = vmatprep.subr.bf16.mxu0 0
      %472 = vmatpush1.bf16.msra.mxu0 0
      %473 = vmatprep.subr.bf16.mxu0 0
      %474 = vmatpush1.bf16.msra.mxu0 0
      %475 = vmatprep.subr.bf16.mxu0 0
      %476 = vmatpush1.bf16.msra.mxu0 0
      %477 = vmatprep.subr.bf16.mxu0 0
      %478 = vmatpush1.bf16.msra.mxu0 0
      %479 = vmatprep.subr.bf16.mxu0 0
      %480 = vmatpush1.bf16.msra.mxu0 0
      %481 = vmatprep.subr.bf16.mxu0 0
      %482 = vmatpush1.bf16.msra.mxu0 0
      %483 = vmatprep.subr.bf16.mxu0 0
      %484 = vmatpush1.bf16.msra.mxu0 0
      %485 = vmatprep.subr.bf16.mxu0 0
      %486 = vmatpush1.bf16.msra.mxu0 0
      %487 = vmatprep.mubr.bf16.mxu0 0
      %488 = vmatmul.mubr.bf16.gmra.mrb[0].mxu0 %v446
      %v489 = vpop.f32.mrb[0].mxu0
      %v490 = vadd.f32 0.0, %v489
      %v491 = vpop.f32.mrb[0].mxu0
      %v492 = vadd.f32 0.0, %v491
      %v493 = vpop.f32.mrb[0].mxu0
      %v494 = vpop.f32.mrb[0].mxu0
      %495 = vdwg.mxu0
      %v497 = vsel %vm444, %v436, 0
      %v500 = vsel %vm448, %v427, 0
      %v503 = vsel %vm448, %v428, 0
      %505 = vmatprep.subr.bf16.mxu0 %v503
      %506 = vmatpush1.bf16.msra.mxu0 %v500
      %507 = vmatprep.subr.bf16.mxu0 0
      %508 = vmatpush1.bf16.msra.mxu0 0
      %509 = vmatprep.subr.bf16.mxu0 0
      %510 = vmatpush1.bf16.msra.mxu0 0
      %511 = vmatprep.subr.bf16.mxu0 0
      %512 = vmatpush1.bf16.msra.mxu0 0
      %513 = vmatprep.subr.bf16.mxu0 0
      %514 = vmatpush1.bf16.msra.mxu0 0
      %515 = vmatprep.subr.bf16.mxu0 0
      %516 = vmatpush1.bf16.msra.mxu0 0
      %517 = vmatprep.subr.bf16.mxu0 0
      %518 = vmatpush1.bf16.msra.mxu0 0
      %519 = vmatprep.subr.bf16.mxu0 0
      %520 = vmatpush1.bf16.msra.mxu0 0
      %521 = vmatprep.subr.bf16.mxu0 0
      %522 = vmatpush1.bf16.msra.mxu0 0
      %523 = vmatprep.subr.bf16.mxu0 0
      %524 = vmatpush1.bf16.msra.mxu0 0
      %525 = vmatprep.subr.bf16.mxu0 0
      %526 = vmatpush1.bf16.msra.mxu0 0
      %527 = vmatprep.subr.bf16.mxu0 0
      %528 = vmatpush1.bf16.msra.mxu0 0
      %529 = vmatprep.subr.bf16.mxu0 0
      %530 = vmatpush1.bf16.msra.mxu0 0
      %531 = vmatprep.subr.bf16.mxu0 0
      %532 = vmatpush1.bf16.msra.mxu0 0
      %533 = vmatprep.subr.bf16.mxu0 0
      %534 = vmatpush1.bf16.msra.mxu0 0
      %535 = vmatprep.subr.bf16.mxu0 0
      %536 = vmatpush1.bf16.msra.mxu0 0
      %537 = vmatprep.mubr.bf16.mxu0 0
      %538 = vmatmul.mubr.bf16.gmra.mrb[0].mxu0 %v497
      %v539 = vpop.f32.mrb[0].mxu0
      %v540 = vadd.f32 %v490, %v539
      %v541 = vpop.f32.mrb[0].mxu0
      %v542 = vadd.f32 %v492, %v541
      %v543 = vpop.f32.mrb[0].mxu0
      %v544 = vpop.f32.mrb[0].mxu0
      %545 = vdwg.mxu0
      %546 = vst [vmem:[%s366] sm:$0xff] %v540
      %547 = vst [vmem:[%s366 + $0x8] sm:$0xff] %v542
      %s548 = smul.u32 2, %s23
      %p549 = scmp.lt.s32.totalorder %s22, 1
      %s550 = scalar_select %p549, %s22, 1
      %p551 = scmp.lt.s32.totalorder %s548, 1
      %s552 = scalar_select %p551, %s548, 1
      %s553 = smul.addr %s550, 2
      %s554 = sadd.s32 %s552, %s553
      %s555 = smul.addr %s554, 4
      %s556 = scalar_lea.vmem %s5, %s555
      %s557 = smul.u32 2, %s23
      %p558 = scmp.lt.s32.totalorder %s22, 1
      %s559 = scalar_select %p558, %s22, 1
      %p560 = scmp.lt.s32.totalorder %s557, 1
      %s561 = scalar_select %p560, %s557, 1
      %s562 = smul.addr %s559, 2
      %s563 = sadd.s32 %s561, %s562
      %s564 = smul.addr %s563, 8
      %s565 = scalar_lea.vmem %s6, %s564
      // Predicated region
      $region41: #{feature_align_pallas.3} parent=39 // pred_check
        %p566 = pneg %p174
      $region42: #{feature_align_pallas.3} parent=39 // pred_check_branch
        %568 = sbr.rel (%p566) target = $region44
      $region43: #{feature_align_pallas.3} parent=39 // pred_region
        %s569 = smul.u32 2, %s23
      $region44: #{feature_align_pallas.3} parent=39 // pred_fallthru
        _
      // Predicated region
      $region45: #{feature_align_pallas.3} parent=39 // pred_check
        %p570 = pneg %p202
      $region46: #{feature_align_pallas.3} parent=39 // pred_check_branch
        %572 = sbr.rel (%p570) target = $region48
      $region47: #{feature_align_pallas.3} parent=39 // pred_region
        %s573 = smul.u32 2, %s23
      $region48: #{feature_align_pallas.3} parent=39 // pred_fallthru
        _
    $region40: #{feature_align_pallas.3} parent=5 // pred_fallthru
      _
    %p574 = scmp.le.s32.totalorder 2, %s13
    // Predicated region
    $region49: #{feature_align_pallas.3} parent=5 // pred_check
      %p575 = pneg %p574
    $region50: #{feature_align_pallas.3} parent=5 // pred_check_branch
      %577 = sbr.rel (%p575) target = $region52
    $region51: #{feature_align_pallas.3} parent=5 // pred_region
      %s578 = ssub.s32 %s13, 2
      // Predicated region
      $region53: #{feature_align_pallas.3} parent=51 // pred_check
        %p579 = pneg %p180
      $region54: #{feature_align_pallas.3} parent=51 // pred_check_branch
        %581 = sbr.rel (%p579) target = $region56
      $region55: #{feature_align_pallas.3} parent=51 // pred_region
        %s582 = smul.u32 2, %s25
        %p583 = scmp.lt.s32.totalorder %s24, 1
        %s584 = scalar_select %p583, %s24, 1
        %p585 = scmp.lt.s32.totalorder %s582, 1
        %s586 = scalar_select %p585, %s582, 1
        %s587 = smul.addr %s584, 2
        %s588 = sadd.s32 %s586, %s587
        %s589 = smul.addr %s588, 4
        %s590 = scalar_lea.vmem %s5, %s589
      $region56: #{feature_align_pallas.3} parent=51 // pred_fallthru
        _
      // Predicated region
      $region57: #{feature_align_pallas.3} parent=51 // pred_check
        %p591 = pneg %p208
      $region58: #{feature_align_pallas.3} parent=51 // pred_check_branch
        %593 = sbr.rel (%p591) target = $region60
      $region59: #{feature_align_pallas.3} parent=51 // pred_region
        %s594 = smul.u32 2, %s25
        %p595 = scmp.lt.s32.totalorder %s24, 1
        %s596 = scalar_select %p595, %s24, 1
        %p597 = scmp.lt.s32.totalorder %s594, 1
        %s598 = scalar_select %p597, %s594, 1
        %s599 = smul.addr %s596, 2
        %s600 = sadd.s32 %s598, %s599
        %s601 = smul.addr %s600, 8
        %s602 = scalar_lea.vmem %s6, %s601
      $region60: #{feature_align_pallas.3} parent=51 // pred_fallthru
        _
    $region52: #{feature_align_pallas.3} parent=5 // pred_fallthru
      _
  $region6: #{feature_align_pallas.3} parent=0 // loop_footer
    %s17 = sadd.s32 1, %s13
  $region7: #{feature_align_pallas.3} parent=0 // loop_footer_branch
    %12 = sbr.rel target = $region3
  $region8: #{feature_align_pallas.3} parent=0 // loop_exit
    _

// kernel: feature_align_pallas.4
$region0: #{feature_align_pallas.4}
  #allocation0 [shape = 'u32[]', space=smem, size = 0x4, offset = 0x4, fixed_abs, tag = 'smem constant byte address 0x4 - core index']
  #allocation1 [shape = 'u32[144,128]{1,0:T(1,128)}', space=vmem, size = 0x12000, scoped, tag = 'internal scratch']
  %s0 = inlined_call_operand.vmem [shape: f32[2,8,256], index: 0, kind: input, shape index: {}]
  %s1 = inlined_call_operand.vmem [shape: bf16[9,18,8], index: 1, kind: input, shape index: {}]
  %s2 = inlined_call_operand.vmem [shape: f32[9,1,256], index: 2, kind: input, shape index: {}]
  %s3 = inlined_call_operand.vmem [shape: f32[18,1], index: 3, kind: input, shape index: {}]
  %s4 = inlined_call_operand.vmem [shape: f32[2,18,256], index: 4, kind: output, shape index: {}]
  %s5 = sld [smem:[#allocation0]]
  $region49: #{feature_align_pallas.4} parent=0
    _
  %s7 = ssub.s32 1, %s5
  %s8 = scalar_select 0, %s7, %s5
  loop: start=0, step=1, limit=4
  $region2: #{feature_align_pallas.4} parent=0 // loop_pre_header
    _
  $region3: #{feature_align_pallas.4} parent=0 // loop_header
    %s10 = sphi 0, %s14
    %p11 = scmp.ge.s32.totalorder %s10, 4
    %s20 = sphi 0, %s22
    %s23 = sphi 0, %s20
    %s24 = sphi 0, %s23
    %s40 = sphi 0, %s24
    %s44 = sphi 0, %s44
    %s46 = sphi 0, %s44
    %s47 = sphi 0, %s46
    %s61 = sphi 0, %s47
    %s65 = sphi 0, %s65
    %s67 = sphi 0, %s65
    %s68 = sphi 0, %s67
    %s82 = sphi 0, %s68
    %s86 = sphi 0, %s86
    %s88 = sphi 0, %s86
    %s89 = sphi 0, %s88
    %s103 = sphi 0, %s89
    %s109 = sphi 0, %s111
    %s112 = sphi 0, %s109
    %s113 = sphi 0, %s112
    %s129 = sphi 0, %s113
  $region4: #{feature_align_pallas.4} parent=0 // loop_header_branch
    %13 = sbr.rel (%p11) target = $region8
  $region5: #{feature_align_pallas.4} parent=0 // loop_body
    %s15 = ssub.s32 %s10, 1
    %s16 = ssub.s32 %s10, 2
    %s17 = sadd.s32 %s10, 1
    %s18 = ssub.s32 %s10, %s17
    %p19 = scmp.eq.s32.totalorder %s18, 0
    %s21 = sadd.s32 %s20, 1
    %s22 = scalar_select %p19, %s20, %s21
    %p25 = pneg %p19
    %p26 = scmp.eq.s32.totalorder %s10, 1
    %p27 = por %p25, %p26
    %p28 = scmp.ne.s32.totalorder %s20, %s23
    %p29 = scmp.eq.s32.totalorder %s10, 0
    %p30 = por %p28, %p29
    %p31 = scmp.ne.s32.totalorder %s20, %s23
    %p32 = scmp.eq.s32.totalorder %s15, 1
    %p33 = por %p31, %p32
    %p34 = scmp.ne.s32.totalorder %s23, %s24
    %p35 = scmp.eq.s32.totalorder %s15, 0
    %p36 = por %p34, %p35
    %p37 = scmp.ne.s32.totalorder %s23, %s24
    %p38 = scmp.eq.s32.totalorder %s16, 1
    %p39 = por %p37, %p38
    %p41 = scmp.ne.s32.totalorder %s24, %s40
    %p42 = scmp.eq.s32.totalorder %s16, 0
    %p43 = por %p41, %p42
    %s45 = sadd.s32 %s44, 1
    %p48 = scmp.eq.s32.totalorder %s10, 1
    %p49 = scmp.ne.s32.totalorder %s44, %s46
    %p50 = scmp.eq.s32.totalorder %s10, 0
    %p51 = por %p49, %p50
    %p52 = scmp.ne.s32.totalorder %s44, %s46
    %p53 = scmp.eq.s32.totalorder %s15, 1
    %p54 = por %p52, %p53
    %p55 = scmp.ne.s32.totalorder %s46, %s47
    %p56 = scmp.eq.s32.totalorder %s15, 0
    %p57 = por %p55, %p56
    %p58 = scmp.ne.s32.totalorder %s46, %s47
    %p59 = scmp.eq.s32.totalorder %s16, 1
    %p60 = por %p58, %p59
    %p62 = scmp.ne.s32.totalorder %s47, %s61
    %p63 = scmp.eq.s32.totalorder %s16, 0
    %p64 = por %p62, %p63
    %s66 = sadd.s32 %s65, 1
    %p69 = scmp.eq.s32.totalorder %s10, 1
    %p70 = scmp.ne.s32.totalorder %s65, %s67
    %p71 = scmp.eq.s32.totalorder %s10, 0
    %p72 = por %p70, %p71
    %p73 = scmp.ne.s32.totalorder %s65, %s67
    %p74 = scmp.eq.s32.totalorder %s15, 1
    %p75 = por %p73, %p74
    %p76 = scmp.ne.s32.totalorder %s67, %s68
    %p77 = scmp.eq.s32.totalorder %s15, 0
    %p78 = por %p76, %p77
    %p79 = scmp.ne.s32.totalorder %s67, %s68
    %p80 = scmp.eq.s32.totalorder %s16, 1
    %p81 = por %p79, %p80
    %p83 = scmp.ne.s32.totalorder %s68, %s82
    %p84 = scmp.eq.s32.totalorder %s16, 0
    %p85 = por %p83, %p84
    %s87 = sadd.s32 %s86, 1
    %p90 = scmp.eq.s32.totalorder %s10, 1
    %p91 = scmp.ne.s32.totalorder %s86, %s88
    %p92 = scmp.eq.s32.totalorder %s10, 0
    %p93 = por %p91, %p92
    %p94 = scmp.ne.s32.totalorder %s86, %s88
    %p95 = scmp.eq.s32.totalorder %s15, 1
    %p96 = por %p94, %p95
    %p97 = scmp.ne.s32.totalorder %s88, %s89
    %p98 = scmp.eq.s32.totalorder %s15, 0
    %p99 = por %p97, %p98
    %p100 = scmp.ne.s32.totalorder %s88, %s89
    %p101 = scmp.eq.s32.totalorder %s16, 1
    %p102 = por %p100, %p101
    %p104 = scmp.ne.s32.totalorder %s89, %s103
    %p105 = scmp.eq.s32.totalorder %s16, 0
    %p106 = por %p104, %p105
    %s107 = ssub.s32 %s10, %s17
    %p108 = scmp.eq.s32.totalorder %s107, 0
    %s110 = sadd.s32 %s109, 1
    %s111 = scalar_select %p108, %s109, %s110
    %p114 = pneg %p108
    %p115 = scmp.eq.s32.totalorder %s10, 1
    %p116 = por %p114, %p115
    %p117 = scmp.ne.s32.totalorder %s109, %s112
    %p118 = scmp.eq.s32.totalorder %s10, 0
    %p119 = por %p117, %p118
    %p120 = scmp.ne.s32.totalorder %s109, %s112
    %p121 = scmp.eq.s32.totalorder %s15, 1
    %p122 = por %p120, %p121
    %p123 = scmp.ne.s32.totalorder %s112, %s113
    %p124 = scmp.eq.s32.totalorder %s15, 0
    %p125 = por %p123, %p124
    %p126 = scmp.ne.s32.totalorder %s112, %s113
    %p127 = scmp.eq.s32.totalorder %s16, 1
    %p128 = por %p126, %p127
    %p130 = scmp.ne.s32.totalorder %s113, %s129
    %p131 = scmp.eq.s32.totalorder %s16, 0
    %p132 = por %p130, %p131
    %p133 = scmp.le.s32.totalorder 1, %s10
    %p134 = scmp.lt.s32.totalorder %s10, 3
    %p135 = pnand %p133, %p134
    %p136 = pneg %p135
    // Predicated region
    $region9: #{feature_align_pallas.4} parent=5 // pred_check
      _
    $region10: #{feature_align_pallas.4} parent=5 // pred_check_branch
      %138 = sbr.rel (%p135) target = $region12
    $region11: #{feature_align_pallas.4} parent=5 // pred_region
      %s139 = ssub.s32 %s10, 1
      // Predicated region
      $region13: #{feature_align_pallas.4} parent=11 // pred_check
        %p140 = pneg %p57
      $region14: #{feature_align_pallas.4} parent=11 // pred_check_branch
        %142 = sbr.rel (%p140) target = $region16
      $region15: #{feature_align_pallas.4} parent=11 // pred_region
        _
      $region16: #{feature_align_pallas.4} parent=11 // pred_fallthru
        _
      // Predicated region
      $region17: #{feature_align_pallas.4} parent=11 // pred_check
        %p143 = pneg %p78
      $region18: #{feature_align_pallas.4} parent=11 // pred_check_branch
        %145 = sbr.rel (%p143) target = $region20
      $region19: #{feature_align_pallas.4} parent=11 // pred_region
        _
      $region20: #{feature_align_pallas.4} parent=11 // pred_fallthru
        _
      // Predicated region
      $region21: #{feature_align_pallas.4} parent=11 // pred_check
        %p146 = pneg %p99
      $region22: #{feature_align_pallas.4} parent=11 // pred_check_branch
        %148 = sbr.rel (%p146) target = $region24
      $region23: #{feature_align_pallas.4} parent=11 // pred_region
        _
      $region24: #{feature_align_pallas.4} parent=11 // pred_fallthru
        _
    $region12: #{feature_align_pallas.4} parent=5 // pred_fallthru
      _
    %p149 = scmp.lt.s32.totalorder %s10, 2
    // Predicated region
    $region25: #{feature_align_pallas.4} parent=5 // pred_check
      %p150 = pneg %p149
    $region26: #{feature_align_pallas.4} parent=5 // pred_check_branch
      %152 = sbr.rel (%p150) target = $region28
    $region27: #{feature_align_pallas.4} parent=5 // pred_region
      // Predicated region
      $region29: #{feature_align_pallas.4} parent=27 // pred_check
        %p153 = pneg %p30
      $region30: #{feature_align_pallas.4} parent=27 // pred_check_branch
        %155 = sbr.rel (%p153) target = $region32
      $region31: #{feature_align_pallas.4} parent=27 // pred_region
        %p156 = scmp.lt.s32.totalorder %s10, 1
        %s157 = scalar_select %p156, %s10, 1
        %s158 = smul.addr %s157, 2
        %s159 = smul.addr %s158, 8
        %s160 = scalar_lea.vmem %s0, %s159
      $region32: #{feature_align_pallas.4} parent=27 // pred_fallthru
        _
    $region28: #{feature_align_pallas.4} parent=5 // pred_fallthru
      _
    %p161 = scmp.le.s32.totalorder 1, %s10
    %p162 = scmp.lt.s32.totalorder %s10, 3
    %p163 = pnand %p161, %p162
    %p164 = pneg %p163
    // Predicated region
    $region33: #{feature_align_pallas.4} parent=5 // pred_check
      _
    $region34: #{feature_align_pallas.4} parent=5 // pred_check_branch
      %166 = sbr.rel (%p163) target = $region36
    $region35: #{feature_align_pallas.4} parent=5 // pred_region
      %s167 = ssub.s32 %s10, 1
      %p168 = scmp.lt.s32.totalorder %s15, 1
      %s169 = scalar_select %p168, %s15, 1
      %s170 = smul.addr %s169, 2
      %s171 = smul.addr %s170, 8
      %s172 = scalar_lea.vmem %s0, %s171
      %p173 = pneg %p36
      %p174 = pneg %p33
      %p175 = pneg %p57
      %p176 = pneg %p54
      %p177 = pneg %p78
      %p178 = pneg %p75
      %p179 = pneg %p99
      %p180 = pneg %p96
      %p181 = pneg %p125
      %p182 = pneg %p122
      %p183 = scmp.lt.s32.totalorder %s15, 1
      %s184 = scalar_select %p183, %s15, 1
      %s185 = smul.addr %s184, 6
      %s186 = smul.addr %s185, 8
      %s187 = scalar_lea.vmem %s4, %s186
      %p188 = scmp.lt.s32.totalorder %s15, 1
      %s189 = scalar_select %p188, %s15, 1
      %s190 = smul.addr %s189, 2
      %s191 = smul.addr %s190, 8
      %s192 = scalar_lea.vmem %s0, %s191
      %p193 = scmp.lt.s32.totalorder %s15, 1
      %s194 = scalar_select %p193, %s15, 1
      %s195 = smul.addr %s194, 6
      %s196 = smul.addr %s195, 8
      %s197 = scalar_lea.vmem %s4, %s196
      %v199 = vld [vmem:[%s192] sm:$0xff]
      %v200 = vld [vmem:[%s192 + $0x8] sm:$0xff]
      %202 = vrot.lane.b32.xlu0 %v200, 17
      %v203 = vpop.permute.xlu0 %202
      %206 = vrot.lane.b32.xlu0 %v199, 17
      %v207 = vpop.permute.xlu0 %206
      %vm208 = vcmask 138240
      %v209 = vsel %vm208, %v207, %v203
      %v212 = vsel %vm208, %v203, %v207
      %v213 = vld [vmem:[%s2] sm:$0x3]
      %v215 = vlaneseq
      %v216 = vshrl.u32 %v215, 7
      %v217 = vsub.s32 0, %v216
      %v218 = vrot.slane %v213, %v217
      %v219 = vlaneseq
      %v220 = vshrl.u32 %v219, 7
      %v221 = vsub.s32 1, %v220
      %v222 = vrot.slane %v213, %v221
      %v225 = vmul.f32 %v212, %v218
      %v226 = vmul.f32 %v209, %v222
      %v227 = vpack.c.bf16 %v225, %v225
      %v228 = vpack.c.bf16 %v226, %v226
      %v229 = vld [vmem:[%s1] sm:$0xf]
      %v230 = vld [vmem:[%s1 + $0x4] sm:$0xf]
      %v231 = vld [vmem:[%s1 + $0x8] sm:$0x1]
      %232 = vrot.lane.b32.xlu0 %v200, 16
      %v233 = vpop.permute.xlu0 %232
      %235 = vrot.lane.b32.xlu0 %v199, 16
      %v236 = vpop.permute.xlu0 %235
      %vm237 = vcmask 130048
      %v238 = vsel %vm237, %v236, %v233
      %v241 = vsel %vm237, %v233, %v236
      %s242 = scalar_lea.vmem %s2, 2
      %v243 = vld [vmem:[%s242] sm:$0x3]
      %v245 = vlaneseq
      %v246 = vshrl.u32 %v245, 7
      %v247 = vsub.s32 0, %v246
      %v248 = vrot.slane %v243, %v247
      %v249 = vlaneseq
      %v250 = vshrl.u32 %v249, 7
      %v251 = vsub.s32 1, %v250
      %v252 = vrot.slane %v243, %v251
      %v255 = vmul.f32 %v241, %v248
      %v256 = vmul.f32 %v238, %v252
      %v257 = vpack.c.bf16 %v255, %v255
      %v258 = vpack.c.bf16 %v256, %v256
      %s259 = scalar_lea.vmem %s1, 12
      %v260 = vld [vmem:[%s259] sm:$0xf]
      %v261 = vld [vmem:[%s259 + $0x4] sm:$0xf]
      %v262 = vld [vmem:[%s259 + $0x8] sm:$0x1]
      %v266 = vunpack.c.l.b16 %v260
      %v267 = vunpack.c.l.b16 %v261
      %v268 = vunpack.c.l.b16 %v262
      %v269 = vpack.c.b16 %v267, %v266
      %v270 = vpack.c.b16 %v268, %v268
      %vm271 = vcmask 64512
      %v273 = vsel %vm271, %v269, 0
      %v276 = vsel %vm271, %v270, 0
      %vm278 = vcmask 1043456
      %v280 = vsel %vm278, %v257, 0
      %v283 = vsel %vm278, %v258, 0
      %285 = vmatprep.subr.bf16.mxu0 %v283
      %286 = vmatpush1.bf16.msra.mxu0 %v280
      %287 = vmatprep.subr.bf16.mxu0 0
      %288 = vmatpush1.bf16.msra.mxu0 0
      %289 = vmatprep.subr.bf16.mxu0 0
      %290 = vmatpush1.bf16.msra.mxu0 0
      %291 = vmatprep.subr.bf16.mxu0 0
      %292 = vmatpush1.bf16.msra.mxu0 0
      %293 = vmatprep.subr.bf16.mxu0 0
      %294 = vmatpush1.bf16.msra.mxu0 0
      %295 = vmatprep.subr.bf16.mxu0 0
      %296 = vmatpush1.bf16.msra.mxu0 0
      %297 = vmatprep.subr.bf16.mxu0 0
      %298 = vmatpush1.bf16.msra.mxu0 0
      %299 = vmatprep.subr.bf16.mxu0 0
      %300 = vmatpush1.bf16.msra.mxu0 0
      %301 = vmatprep.subr.bf16.mxu0 0
      %302 = vmatpush1.bf16.msra.mxu0 0
      %303 = vmatprep.subr.bf16.mxu0 0
      %304 = vmatpush1.bf16.msra.mxu0 0
      %305 = vmatprep.subr.bf16.mxu0 0
      %306 = vmatpush1.bf16.msra.mxu0 0
      %307 = vmatprep.subr.bf16.mxu0 0
      %308 = vmatpush1.bf16.msra.mxu0 0
      %309 = vmatprep.subr.bf16.mxu0 0
      %310 = vmatpush1.bf16.msra.mxu0 0
      %311 = vmatprep.subr.bf16.mxu0 0
      %312 = vmatpush1.bf16.msra.mxu0 0
      %313 = vmatprep.subr.bf16.mxu0 0
      %314 = vmatpush1.bf16.msra.mxu0 0
      %315 = vmatprep.subr.bf16.mxu0 0
      %316 = vmatpush1.bf16.msra.mxu0 0
      %317 = vmatprep.mubr.bf16.mxu0 0
      %318 = vmatmul.mubr.bf16.gmra.mrb[0].mxu0 %v273
      %v319 = vpop.f32.mrb[0].mxu0
      %v320 = vadd.f32 0.0, %v319
      %v321 = vpop.f32.mrb[0].mxu0
      %v322 = vadd.f32 0.0, %v321
      %v323 = vpop.f32.mrb[0].mxu0
      %v324 = vadd.f32 0.0, %v323
      %v325 = vpop.f32.mrb[0].mxu0
      %v326 = vadd.f32 0.0, %v325
      %327 = vmatprep.mubr.bf16.mxu0 0
      %328 = vmatmul.mubr.bf16.gmra.mrb[0].mxu0 %v276
      %v329 = vpop.f32.mrb[0].mxu0
      %v330 = vadd.f32 0.0, %v329
      %v331 = vpop.f32.mrb[0].mxu0
      %v332 = vadd.f32 0.0, %v331
      %v333 = vpop.f32.mrb[0].mxu0
      %v334 = vpop.f32.mrb[0].mxu0
      %335 = vdwg.mxu0
      %v339 = vunpack.c.l.b16 %v229
      %v340 = vunpack.c.l.b16 %v230
      %v341 = vunpack.c.l.b16 %v231
      %v342 = vpack.c.b16 %v340, %v339
      %v343 = vpack.c.b16 %v341, %v341
      %v345 = vsel %vm271, %v342, 0
      %v348 = vsel %vm271, %v343, 0
      %v351 = vsel %vm278, %v227, 0
      %v354 = vsel %vm278, %v228, 0
      %356 = vmatprep.subr.bf16.mxu0 %v354
      %357 = vmatpush1.bf16.msra.mxu0 %v351
      %358 = vmatprep.subr.bf16.mxu0 0
      %359 = vmatpush1.bf16.msra.mxu0 0
      %360 = vmatprep.subr.bf16.mxu0 0
      %361 = vmatpush1.bf16.msra.mxu0 0
      %362 = vmatprep.subr.bf16.mxu0 0
      %363 = vmatpush1.bf16.msra.mxu0 0
      %364 = vmatprep.subr.bf16.mxu0 0
      %365 = vmatpush1.bf16.msra.mxu0 0
      %366 = vmatprep.subr.bf16.mxu0 0
      %367 = vmatpush1.bf16.msra.mxu0 0
      %368 = vmatprep.subr.bf16.mxu0 0
      %369 = vmatpush1.bf16.msra.mxu0 0
      %370 = vmatprep.subr.bf16.mxu0 0
      %371 = vmatpush1.bf16.msra.mxu0 0
      %372 = vmatprep.subr.bf16.mxu0 0
      %373 = vmatpush1.bf16.msra.mxu0 0
      %374 = vmatprep.subr.bf16.mxu0 0
      %375 = vmatpush1.bf16.msra.mxu0 0
      %376 = vmatprep.subr.bf16.mxu0 0
      %377 = vmatpush1.bf16.msra.mxu0 0
      %378 = vmatprep.subr.bf16.mxu0 0
      %379 = vmatpush1.bf16.msra.mxu0 0
      %380 = vmatprep.subr.bf16.mxu0 0
      %381 = vmatpush1.bf16.msra.mxu0 0
      %382 = vmatprep.subr.bf16.mxu0 0
      %383 = vmatpush1.bf16.msra.mxu0 0
      %384 = vmatprep.subr.bf16.mxu0 0
      %385 = vmatpush1.bf16.msra.mxu0 0
      %386 = vmatprep.subr.bf16.mxu0 0
      %387 = vmatpush1.bf16.msra.mxu0 0
      %388 = vmatprep.mubr.bf16.mxu0 0
      %389 = vmatmul.mubr.bf16.gmra.mrb[0].mxu0 %v345
      %v390 = vpop.f32.mrb[0].mxu0
      %v391 = vadd.f32 %v320, %v390
      %v392 = vpop.f32.mrb[0].mxu0
      %v393 = vadd.f32 %v322, %v392
      %v394 = vpop.f32.mrb[0].mxu0
      %v395 = vadd.f32 %v324, %v394
      %v396 = vpop.f32.mrb[0].mxu0
      %v397 = vadd.f32 %v326, %v396
      %398 = vmatprep.mubr.bf16.mxu0 0
      %399 = vmatmul.mubr.bf16.gmra.mrb[0].mxu0 %v348
      %v400 = vpop.f32.mrb[0].mxu0
      %v401 = vadd.f32 %v330, %v400
      %v402 = vpop.f32.mrb[0].mxu0
      %v403 = vadd.f32 %v332, %v402
      %v404 = vpop.f32.mrb[0].mxu0
      %v405 = vpop.f32.mrb[0].mxu0
      %406 = vdwg.mxu0
      %407 = vrot.lane.b32.xlu0 %v200, 15
      %v408 = vpop.permute.xlu0 %407
      %410 = vrot.lane.b32.xlu0 %v199, 15
      %v411 = vpop.permute.xlu0 %410
      %vm412 = vcmask 121856
      %v413 = vsel %vm412, %v411, %v408
      %v416 = vsel %vm412, %v408, %v411
      %s417 = scalar_lea.vmem %s2, 4
      %v418 = vld [vmem:[%s417] sm:$0x3]
      %v420 = vlaneseq
      %v421 = vshrl.u32 %v420, 7
      %v422 = vsub.s32 0, %v421
      %v423 = vrot.slane %v418, %v422
      %v424 = vlaneseq
      %v425 = vshrl.u32 %v424, 7
      %v426 = vsub.s32 1, %v425
      %v427 = vrot.slane %v418, %v426
      %v430 = vmul.f32 %v416, %v423
      %v431 = vmul.f32 %v413, %v427
      %v432 = vpack.c.bf16 %v430, %v430
      %v433 = vpack.c.bf16 %v431, %v431
      %s434 = scalar_lea.vmem %s1, 24
      %v435 = vld [vmem:[%s434] sm:$0xf]
      %v436 = vld [vmem:[%s434 + $0x4] sm:$0xf]
      %v437 = vld [vmem:[%s434 + $0x8] sm:$0x1]
      %v441 = vunpack.c.l.b16 %v435
      %v442 = vunpack.c.l.b16 %v436
      %v443 = vunpack.c.l.b16 %v437
      %v444 = vpack.c.b16 %v442, %v441
      %v445 = vpack.c.b16 %v443, %v443
      %v447 = vsel %vm271, %v444, 0
      %v450 = vsel %vm271, %v445, 0
      %v453 = vsel %vm278, %v432, 0
      %v456 = vsel %vm278, %v433, 0
      %458 = vmatprep.subr.bf16.mxu0 %v456
      %459 = vmatpush1.bf16.msra.mxu0 %v453
      %460 = vmatprep.subr.bf16.mxu0 0
      %461 = vmatpush1.bf16.msra.mxu0 0
      %462 = vmatprep.subr.bf16.mxu0 0
      %463 = vmatpush1.bf16.msra.mxu0 0
      %464 = vmatprep.subr.bf16.mxu0 0
      %465 = vmatpush1.bf16.msra.mxu0 0
      %466 = vmatprep.subr.bf16.mxu0 0
      %467 = vmatpush1.bf16.msra.mxu0 0
      %468 = vmatprep.subr.bf16.mxu0 0
      %469 = vmatpush1.bf16.msra.mxu0 0
      %470 = vmatprep.subr.bf16.mxu0 0
      %471 = vmatpush1.bf16.msra.mxu0 0
      %472 = vmatprep.subr.bf16.mxu0 0
      %473 = vmatpush1.bf16.msra.mxu0 0
      %474 = vmatprep.subr.bf16.mxu0 0
      %475 = vmatpush1.bf16.msra.mxu0 0
      %476 = vmatprep.subr.bf16.mxu0 0
      %477 = vmatpush1.bf16.msra.mxu0 0
      %478 = vmatprep.subr.bf16.mxu0 0
      %479 = vmatpush1.bf16.msra.mxu0 0
      %480 = vmatprep.subr.bf16.mxu0 0
      %481 = vmatpush1.bf16.msra.mxu0 0
      %482 = vmatprep.subr.bf16.mxu0 0
      %483 = vmatpush1.bf16.msra.mxu0 0
      %484 = vmatprep.subr.bf16.mxu0 0
      %485 = vmatpush1.bf16.msra.mxu0 0
      %486 = vmatprep.subr.bf16.mxu0 0
      %487 = vmatpush1.bf16.msra.mxu0 0
      %488 = vmatprep.subr.bf16.mxu0 0
      %489 = vmatpush1.bf16.msra.mxu0 0
      %490 = vmatprep.mubr.bf16.mxu0 0
      %491 = vmatmul.mubr.bf16.gmra.mrb[0].mxu0 %v447
      %v492 = vpop.f32.mrb[0].mxu0
      %v493 = vadd.f32 0.0, %v492
      %v494 = vpop.f32.mrb[0].mxu0
      %v495 = vadd.f32 0.0, %v494
      %v496 = vpop.f32.mrb[0].mxu0
      %v497 = vadd.f32 0.0, %v496
      %v498 = vpop.f32.mrb[0].mxu0
      %v499 = vadd.f32 0.0, %v498
      %500 = vmatprep.mubr.bf16.mxu0 0
      %501 = vmatmul.mubr.bf16.gmra.mrb[0].mxu0 %v450
      %v502 = vpop.f32.mrb[0].mxu0
      %v503 = vadd.f32 0.0, %v502
      %v504 = vpop.f32.mrb[0].mxu0
      %v505 = vadd.f32 0.0, %v504
      %v506 = vpop.f32.mrb[0].mxu0
      %v507 = vpop.f32.mrb[0].mxu0
      %508 = vdwg.mxu0
      %v509 = vadd.f32 %v391, %v493
      %v510 = vadd.f32 %v393, %v495
      %v511 = vadd.f32 %v395, %v497
      %v512 = vadd.f32 %v397, %v499
      %v513 = vadd.f32 %v401, %v503
      %v514 = vadd.f32 %v403, %v505
      %515 = vrot.lane.b32.xlu0 %v200, 1
      %v516 = vpop.permute.xlu0 %515
      %518 = vrot.lane.b32.xlu0 %v199, 1
      %v519 = vpop.permute.xlu0 %518
      %vm520 = vcmask 7168
      %v521 = vsel %vm520, %v519, %v516
      %v524 = vsel %vm520, %v516, %v519
      %s525 = scalar_lea.vmem %s2, 6
      %v526 = vld [vmem:[%s525] sm:$0x3]
      %v528 = vlaneseq
      %v529 = vshrl.u32 %v528, 7
      %v530 = vsub.s32 0, %v529
      %v531 = vrot.slane %v526, %v530
      %v532 = vlaneseq
      %v533 = vshrl.u32 %v532, 7
      %v534 = vsub.s32 1, %v533
      %v535 = vrot.slane %v526, %v534
      %v538 = vmul.f32 %v524, %v531
      %v539 = vmul.f32 %v521, %v535
      %v540 = vpack.c.bf16 %v538, %v538
      %v541 = vpack.c.bf16 %v539, %v539
      %s542 = scalar_lea.vmem %s1, 36
      %v543 = vld [vmem:[%s542] sm:$0xf]
      %v544 = vld [vmem:[%s542 + $0x4] sm:$0xf]
      %v545 = vld [vmem:[%s542 + $0x8] sm:$0x1]
      %v549 = vunpack.c.l.b16 %v543
      %v550 = vunpack.c.l.b16 %v544
      %v551 = vunpack.c.l.b16 %v545
      %v552 = vpack.c.b16 %v550, %v549
      %v553 = vpack.c.b16 %v551, %v551
      %v555 = vsel %vm271, %v552, 0
      %v558 = vsel %vm271, %v553, 0
      %v561 = vsel %vm278, %v540, 0
      %v564 = vsel %vm278, %v541, 0
      %566 = vmatprep.subr.bf16.mxu0 %v564
      %567 = vmatpush1.bf16.msra.mxu0 %v561
      %568 = vmatprep.subr.bf16.mxu0 0
      %569 = vmatpush1.bf16.msra.mxu0 0
      %570 = vmatprep.subr.bf16.mxu0 0
      %571 = vmatpush1.bf16.msra.mxu0 0
      %572 = vmatprep.subr.bf16.mxu0 0
      %573 = vmatpush1.bf16.msra.mxu0 0
      %574 = vmatprep.subr.bf16.mxu0 0
      %575 = vmatpush1.bf16.msra.mxu0 0
      %576 = vmatprep.subr.bf16.mxu0 0
      %577 = vmatpush1.bf16.msra.mxu0 0
      %578 = vmatprep.subr.bf16.mxu0 0
      %579 = vmatpush1.bf16.msra.mxu0 0
      %580 = vmatprep.subr.bf16.mxu0 0
      %581 = vmatpush1.bf16.msra.mxu0 0
      %582 = vmatprep.subr.bf16.mxu0 0
      %583 = vmatpush1.bf16.msra.mxu0 0
      %584 = vmatprep.subr.bf16.mxu0 0
      %585 = vmatpush1.bf16.msra.mxu0 0
      %586 = vmatprep.subr.bf16.mxu0 0
      %587 = vmatpush1.bf16.msra.mxu0 0
      %588 = vmatprep.subr.bf16.mxu0 0
      %589 = vmatpush1.bf16.msra.mxu0 0
      %590 = vmatprep.subr.bf16.mxu0 0
      %591 = vmatpush1.bf16.msra.mxu0 0
      %592 = vmatprep.subr.bf16.mxu0 0
      %593 = vmatpush1.bf16.msra.mxu0 0
      %594 = vmatprep.subr.bf16.mxu0 0
      %595 = vmatpush1.bf16.msra.mxu0 0
      %596 = vmatprep.subr.bf16.mxu0 0
      %597 = vmatpush1.bf16.msra.mxu0 0
      %598 = vmatprep.mubr.bf16.mxu0 0
      %599 = vmatmul.mubr.bf16.gmra.mrb[0].mxu0 %v555
      %v600 = vpop.f32.mrb[0].mxu0
      %v601 = vadd.f32 0.0, %v600
      %v602 = vpop.f32.mrb[0].mxu0
      %v603 = vadd.f32 0.0, %v602
      %v604 = vpop.f32.mrb[0].mxu0
      %v605 = vadd.f32 0.0, %v604
      %v606 = vpop.f32.mrb[0].mxu0
      %v607 = vadd.f32 0.0, %v606
      %608 = vmatprep.mubr.bf16.mxu0 0
      %609 = vmatmul.mubr.bf16.gmra.mrb[0].mxu0 %v558
      %v610 = vpop.f32.mrb[0].mxu0
      %v611 = vadd.f32 0.0, %v610
      %v612 = vpop.f32.mrb[0].mxu0
      %v613 = vadd.f32 0.0, %v612
      %v614 = vpop.f32.mrb[0].mxu0
      %v615 = vpop.f32.mrb[0].mxu0
      %616 = vdwg.mxu0
      %v617 = vadd.f32 %v509, %v601
      %v618 = vadd.f32 %v510, %v603
      %v619 = vadd.f32 %v511, %v605
      %v620 = vadd.f32 %v512, %v607
      %v621 = vadd.f32 %v513, %v611
      %v622 = vadd.f32 %v514, %v613
      %s623 = scalar_lea.vmem %s2, 8
      %v624 = vld [vmem:[%s623] sm:$0x3]
      %v626 = vlaneseq
      %v627 = vshrl.u32 %v626, 7
      %v628 = vsub.s32 0, %v627
      %v629 = vrot.slane %v624, %v628
      %v630 = vlaneseq
      %v631 = vshrl.u32 %v630, 7
      %v632 = vsub.s32 1, %v631
      %v633 = vrot.slane %v624, %v632
      %v636 = vmul.f32 %v199, %v629
      %v637 = vmul.f32 %v200, %v633
      %v638 = vpack.c.bf16 %v636, %v636
      %v639 = vpack.c.bf16 %v637, %v637
      %s640 = scalar_lea.vmem %s1, 48
      %v641 = vld [vmem:[%s640] sm:$0xf]
      %v642 = vld [vmem:[%s640 + $0x4] sm:$0xf]
      %v643 = vld [vmem:[%s640 + $0x8] sm:$0x1]
      %v647 = vunpack.c.l.b16 %v641
      %v648 = vunpack.c.l.b16 %v642
      %v649 = vunpack.c.l.b16 %v643
      %v650 = vpack.c.b16 %v648, %v647
      %v651 = vpack.c.b16 %v649, %v649
      %v653 = vsel %vm271, %v650, 0
      %v656 = vsel %vm271, %v651, 0
      %v659 = vsel %vm278, %v638, 0
      %v662 = vsel %vm278, %v639, 0
      %664 = vmatprep.subr.bf16.mxu0 %v662
      %665 = vmatpush1.bf16.msra.mxu0 %v659
      %666 = vmatprep.subr.bf16.mxu0 0
      %667 = vmatpush1.bf16.msra.mxu0 0
      %668 = vmatprep.subr.bf16.mxu0 0
      %669 = vmatpush1.bf16.msra.mxu0 0
      %670 = vmatprep.subr.bf16.mxu0 0
      %671 = vmatpush1.bf16.msra.mxu0 0
      %672 = vmatprep.subr.bf16.mxu0 0
      %673 = vmatpush1.bf16.msra.mxu0 0
      %674 = vmatprep.subr.bf16.mxu0 0
      %675 = vmatpush1.bf16.msra.mxu0 0
      %676 = vmatprep.subr.bf16.mxu0 0
      %677 = vmatpush1.bf16.msra.mxu0 0
      %678 = vmatprep.subr.bf16.mxu0 0
      %679 = vmatpush1.bf16.msra.mxu0 0
      %680 = vmatprep.subr.bf16.mxu0 0
      %681 = vmatpush1.bf16.msra.mxu0 0
      %682 = vmatprep.subr.bf16.mxu0 0
      %683 = vmatpush1.bf16.msra.mxu0 0
      %684 = vmatprep.subr.bf16.mxu0 0
      %685 = vmatpush1.bf16.msra.mxu0 0
      %686 = vmatprep.subr.bf16.mxu0 0
      %687 = vmatpush1.bf16.msra.mxu0 0
      %688 = vmatprep.subr.bf16.mxu0 0
      %689 = vmatpush1.bf16.msra.mxu0 0
      %690 = vmatprep.subr.bf16.mxu0 0
      %691 = vmatpush1.bf16.msra.mxu0 0
      %692 = vmatprep.subr.bf16.mxu0 0
      %693 = vmatpush1.bf16.msra.mxu0 0
      %694 = vmatprep.subr.bf16.mxu0 0
      %695 = vmatpush1.bf16.msra.mxu0 0
      %696 = vmatprep.mubr.bf16.mxu0 0
      %697 = vmatmul.mubr.bf16.gmra.mrb[0].mxu0 %v653
      %v698 = vpop.f32.mrb[0].mxu0
      %v699 = vadd.f32 0.0, %v698
      %v700 = vpop.f32.mrb[0].mxu0
      %v701 = vadd.f32 0.0, %v700
      %v702 = vpop.f32.mrb[0].mxu0
      %v703 = vadd.f32 0.0, %v702
      %v704 = vpop.f32.mrb[0].mxu0
      %v705 = vadd.f32 0.0, %v704
      %706 = vmatprep.mubr.bf16.mxu0 0
      %707 = vmatmul.mubr.bf16.gmra.mrb[0].mxu0 %v656
      %v708 = vpop.f32.mrb[0].mxu0
      %v709 = vadd.f32 0.0, %v708
      %v710 = vpop.f32.mrb[0].mxu0
      %v711 = vadd.f32 0.0, %v710
      %v712 = vpop.f32.mrb[0].mxu0
      %v713 = vpop.f32.mrb[0].mxu0
      %714 = vdwg.mxu0
      %v715 = vadd.f32 %v617, %v699
      %v716 = vadd.f32 %v618, %v701
      %v717 = vadd.f32 %v619, %v703
      %v718 = vadd.f32 %v620, %v705
      %v719 = vadd.f32 %v621, %v709
      %v720 = vadd.f32 %v622, %v711
      %721 = vrot.lane.b32.xlu0 %v199, 127
      %v722 = vpop.permute.xlu0 %721
      %723 = vrot.lane.b32.xlu0 %v200, 127
      %v724 = vpop.permute.xlu0 %723
      %vm725 = vcmask 1039360
      %v726 = vsel %vm725, %v722, %v724
      %v730 = vsel %vm725, %v724, %v722
      %s731 = scalar_lea.vmem %s2, 10
      %v732 = vld [vmem:[%s731] sm:$0x3]
      %v734 = vlaneseq
      %v735 = vshrl.u32 %v734, 7
      %v736 = vsub.s32 0, %v735
      %v737 = vrot.slane %v732, %v736
      %v738 = vlaneseq
      %v739 = vshrl.u32 %v738, 7
      %v740 = vsub.s32 1, %v739
      %v741 = vrot.slane %v732, %v740
      %v744 = vmul.f32 %v726, %v737
      %v745 = vmul.f32 %v730, %v741
      %v746 = vpack.c.bf16 %v744, %v744
      %v747 = vpack.c.bf16 %v745, %v745
      %s748 = scalar_lea.vmem %s1, 60
      %v749 = vld [vmem:[%s748] sm:$0xf]
      %v750 = vld [vmem:[%s748 + $0x4] sm:$0xf]
      %v751 = vld [vmem:[%s748 + $0x8] sm:$0x1]
      %v755 = vunpack.c.l.b16 %v749
      %v756 = vunpack.c.l.b16 %v750
      %v757 = vunpack.c.l.b16 %v751
      %v758 = vpack.c.b16 %v756, %v755
      %v759 = vpack.c.b16 %v757, %v757
      %v761 = vsel %vm271, %v758, 0
      %v764 = vsel %vm271, %v759, 0
      %v767 = vsel %vm278, %v746, 0
      %v770 = vsel %vm278, %v747, 0
      %772 = vmatprep.subr.bf16.mxu0 %v770
      %773 = vmatpush1.bf16.msra.mxu0 %v767
      %774 = vmatprep.subr.bf16.mxu0 0
      %775 = vmatpush1.bf16.msra.mxu0 0
      %776 = vmatprep.subr.bf16.mxu0 0
      %777 = vmatpush1.bf16.msra.mxu0 0
      %778 = vmatprep.subr.bf16.mxu0 0
      %779 = vmatpush1.bf16.msra.mxu0 0
      %780 = vmatprep.subr.bf16.mxu0 0
      %781 = vmatpush1.bf16.msra.mxu0 0
      %782 = vmatprep.subr.bf16.mxu0 0
      %783 = vmatpush1.bf16.msra.mxu0 0
      %784 = vmatprep.subr.bf16.mxu0 0
      %785 = vmatpush1.bf16.msra.mxu0 0
      %786 = vmatprep.subr.bf16.mxu0 0
      %787 = vmatpush1.bf16.msra.mxu0 0
      %788 = vmatprep.subr.bf16.mxu0 0
      %789 = vmatpush1.bf16.msra.mxu0 0
      %790 = vmatprep.subr.bf16.mxu0 0
      %791 = vmatpush1.bf16.msra.mxu0 0
      %792 = vmatprep.subr.bf16.mxu0 0
      %793 = vmatpush1.bf16.msra.mxu0 0
      %794 = vmatprep.subr.bf16.mxu0 0
      %795 = vmatpush1.bf16.msra.mxu0 0
      %796 = vmatprep.subr.bf16.mxu0 0
      %797 = vmatpush1.bf16.msra.mxu0 0
      %798 = vmatprep.subr.bf16.mxu0 0
      %799 = vmatpush1.bf16.msra.mxu0 0
      %800 = vmatprep.subr.bf16.mxu0 0
      %801 = vmatpush1.bf16.msra.mxu0 0
      %802 = vmatprep.subr.bf16.mxu0 0
      %803 = vmatpush1.bf16.msra.mxu0 0
      %804 = vmatprep.mubr.bf16.mxu0 0
      %805 = vmatmul.mubr.bf16.gmra.mrb[0].mxu0 %v761
      %v806 = vpop.f32.mrb[0].mxu0
      %v807 = vadd.f32 0.0, %v806
      %v808 = vpop.f32.mrb[0].mxu0
      %v809 = vadd.f32 0.0, %v808
      %v810 = vpop.f32.mrb[0].mxu0
      %v811 = vadd.f32 0.0, %v810
      %v812 = vpop.f32.mrb[0].mxu0
      %v813 = vadd.f32 0.0, %v812
      %814 = vmatprep.mubr.bf16.mxu0 0
      %815 = vmatmul.mubr.bf16.gmra.mrb[0].mxu0 %v764
      %v816 = vpop.f32.mrb[0].mxu0
      %v817 = vadd.f32 0.0, %v816
      %v818 = vpop.f32.mrb[0].mxu0
      %v819 = vadd.f32 0.0, %v818
      %v820 = vpop.f32.mrb[0].mxu0
      %v821 = vpop.f32.mrb[0].mxu0
      %822 = vdwg.mxu0
      %v823 = vadd.f32 %v715, %v807
      %v824 = vadd.f32 %v716, %v809
      %v825 = vadd.f32 %v717, %v811
      %v826 = vadd.f32 %v718, %v813
      %v827 = vadd.f32 %v719, %v817
      %v828 = vadd.f32 %v720, %v819
      %829 = vrot.lane.b32.xlu0 %v199, 113
      %v830 = vpop.permute.xlu0 %829
      %831 = vrot.lane.b32.xlu0 %v200, 113
      %v832 = vpop.permute.xlu0 %831
      %vm833 = vcmask 924672
      %v834 = vsel %vm833, %v830, %v832
      %v838 = vsel %vm833, %v832, %v830
      %s839 = scalar_lea.vmem %s2, 12
      %v840 = vld [vmem:[%s839] sm:$0x3]
      %v842 = vlaneseq
      %v843 = vshrl.u32 %v842, 7
      %v844 = vsub.s32 0, %v843
      %v845 = vrot.slane %v840, %v844
      %v846 = vlaneseq
      %v847 = vshrl.u32 %v846, 7
      %v848 = vsub.s32 1, %v847
      %v849 = vrot.slane %v840, %v848
      %v852 = vmul.f32 %v834, %v845
      %v853 = vmul.f32 %v838, %v849
      %v854 = vpack.c.bf16 %v852, %v852
      %v855 = vpack.c.bf16 %v853, %v853
      %s856 = scalar_lea.vmem %s1, 72
      %v857 = vld [vmem:[%s856] sm:$0xf]
      %v858 = vld [vmem:[%s856 + $0x4] sm:$0xf]
      %v859 = vld [vmem:[%s856 + $0x8] sm:$0x1]
      %v863 = vunpack.c.l.b16 %v857
      %v864 = vunpack.c.l.b16 %v858
      %v865 = vunpack.c.l.b16 %v859
      %v866 = vpack.c.b16 %v864, %v863
      %v867 = vpack.c.b16 %v865, %v865
      %v869 = vsel %vm271, %v866, 0
      %v872 = vsel %vm271, %v867, 0
      %v875 = vsel %vm278, %v854, 0
      %v878 = vsel %vm278, %v855, 0
      %880 = vmatprep.subr.bf16.mxu0 %v878
      %881 = vmatpush1.bf16.msra.mxu0 %v875
      %882 = vmatprep.subr.bf16.mxu0 0
      %883 = vmatpush1.bf16.msra.mxu0 0
      %884 = vmatprep.subr.bf16.mxu0 0
      %885 = vmatpush1.bf16.msra.mxu0 0
      %886 = vmatprep.subr.bf16.mxu0 0
      %887 = vmatpush1.bf16.msra.mxu0 0
      %888 = vmatprep.subr.bf16.mxu0 0
      %889 = vmatpush1.bf16.msra.mxu0 0
      %890 = vmatprep.subr.bf16.mxu0 0
      %891 = vmatpush1.bf16.msra.mxu0 0
      %892 = vmatprep.subr.bf16.mxu0 0
      %893 = vmatpush1.bf16.msra.mxu0 0
      %894 = vmatprep.subr.bf16.mxu0 0
      %895 = vmatpush1.bf16.msra.mxu0 0
      %896 = vmatprep.subr.bf16.mxu0 0
      %897 = vmatpush1.bf16.msra.mxu0 0
      %898 = vmatprep.subr.bf16.mxu0 0
      %899 = vmatpush1.bf16.msra.mxu0 0
      %900 = vmatprep.subr.bf16.mxu0 0
      %901 = vmatpush1.bf16.msra.mxu0 0
      %902 = vmatprep.subr.bf16.mxu0 0
      %903 = vmatpush1.bf16.msra.mxu0 0
      %904 = vmatprep.subr.bf16.mxu0 0
      %905 = vmatpush1.bf16.msra.mxu0 0
      %906 = vmatprep.subr.bf16.mxu0 0
      %907 = vmatpush1.bf16.msra.mxu0 0
      %908 = vmatprep.subr.bf16.mxu0 0
      %909 = vmatpush1.bf16.msra.mxu0 0
      %910 = vmatprep.subr.bf16.mxu0 0
      %911 = vmatpush1.bf16.msra.mxu0 0
      %912 = vmatprep.mubr.bf16.mxu0 0
      %913 = vmatmul.mubr.bf16.gmra.mrb[0].mxu0 %v869
      %v914 = vpop.f32.mrb[0].mxu0
      %v915 = vadd.f32 0.0, %v914
      %v916 = vpop.f32.mrb[0].mxu0
      %v917 = vadd.f32 0.0, %v916
      %v918 = vpop.f32.mrb[0].mxu0
      %v919 = vadd.f32 0.0, %v918
      %v920 = vpop.f32.mrb[0].mxu0
      %v921 = vadd.f32 0.0, %v920
      %922 = vmatprep.mubr.bf16.mxu0 0
      %923 = vmatmul.mubr.bf16.gmra.mrb[0].mxu0 %v872
      %v924 = vpop.f32.mrb[0].mxu0
      %v925 = vadd.f32 0.0, %v924
      %v926 = vpop.f32.mrb[0].mxu0
      %v927 = vadd.f32 0.0, %v926
      %v928 = vpop.f32.mrb[0].mxu0
      %v929 = vpop.f32.mrb[0].mxu0
      %930 = vdwg.mxu0
      %v931 = vadd.f32 %v823, %v915
      %v932 = vadd.f32 %v824, %v917
      %v933 = vadd.f32 %v825, %v919
      %v934 = vadd.f32 %v826, %v921
      %v935 = vadd.f32 %v827, %v925
      %v936 = vadd.f32 %v828, %v927
      %937 = vrot.lane.b32.xlu0 %v199, 112
      %v938 = vpop.permute.xlu0 %937
      %939 = vrot.lane.b32.xlu0 %v200, 112
      %v940 = vpop.permute.xlu0 %939
      %vm941 = vcmask 916480
      %v942 = vsel %vm941, %v938, %v940
      %v946 = vsel %vm941, %v940, %v938
      %s947 = scalar_lea.vmem %s2, 14
      %v948 = vld [vmem:[%s947] sm:$0x3]
      %v950 = vlaneseq
      %v951 = vshrl.u32 %v950, 7
      %v952 = vsub.s32 0, %v951
      %v953 = vrot.slane %v948, %v952
      %v954 = vlaneseq
      %v955 = vshrl.u32 %v954, 7
      %v956 = vsub.s32 1, %v955
      %v957 = vrot.slane %v948, %v956
      %v960 = vmul.f32 %v942, %v953
      %v961 = vmul.f32 %v946, %v957
      %v962 = vpack.c.bf16 %v960, %v960
      %v963 = vpack.c.bf16 %v961, %v961
      %s964 = scalar_lea.vmem %s1, 84
      %v965 = vld [vmem:[%s964] sm:$0xf]
      %v966 = vld [vmem:[%s964 + $0x4] sm:$0xf]
      %v967 = vld [vmem:[%s964 + $0x8] sm:$0x1]
      %v971 = vunpack.c.l.b16 %v965
      %v972 = vunpack.c.l.b16 %v966
      %v973 = vunpack.c.l.b16 %v967
      %v974 = vpack.c.b16 %v972, %v971
      %v975 = vpack.c.b16 %v973, %v973
      %v977 = vsel %vm271, %v974, 0
      %v980 = vsel %vm271, %v975, 0
      %v983 = vsel %vm278, %v962, 0
      %v986 = vsel %vm278, %v963, 0
      %988 = vmatprep.subr.bf16.mxu0 %v986
      %989 = vmatpush1.bf16.msra.mxu0 %v983
      %990 = vmatprep.subr.bf16.mxu0 0
      %991 = vmatpush1.bf16.msra.mxu0 0
      %992 = vmatprep.subr.bf16.mxu0 0
      %993 = vmatpush1.bf16.msra.mxu0 0
      %994 = vmatprep.subr.bf16.mxu0 0
      %995 = vmatpush1.bf16.msra.mxu0 0
      %996 = vmatprep.subr.bf16.mxu0 0
      %997 = vmatpush1.bf16.msra.mxu0 0
      %998 = vmatprep.subr.bf16.mxu0 0
      %999 = vmatpush1.bf16.msra.mxu0 0
      %1000 = vmatprep.subr.bf16.mxu0 0
      %1001 = vmatpush1.bf16.msra.mxu0 0
      %1002 = vmatprep.subr.bf16.mxu0 0
      %1003 = vmatpush1.bf16.msra.mxu0 0
      %1004 = vmatprep.subr.bf16.mxu0 0
      %1005 = vmatpush1.bf16.msra.mxu0 0
      %1006 = vmatprep.subr.bf16.mxu0 0
      %1007 = vmatpush1.bf16.msra.mxu0 0
      %1008 = vmatprep.subr.bf16.mxu0 0
      %1009 = vmatpush1.bf16.msra.mxu0 0
      %1010 = vmatprep.subr.bf16.mxu0 0
      %1011 = vmatpush1.bf16.msra.mxu0 0
      %1012 = vmatprep.subr.bf16.mxu0 0
      %1013 = vmatpush1.bf16.msra.mxu0 0
      %1014 = vmatprep.subr.bf16.mxu0 0
      %1015 = vmatpush1.bf16.msra.mxu0 0
      %1016 = vmatprep.subr.bf16.mxu0 0
      %1017 = vmatpush1.bf16.msra.mxu0 0
      %1018 = vmatprep.subr.bf16.mxu0 0
      %1019 = vmatpush1.bf16.msra.mxu0 0
      %1020 = vmatprep.mubr.bf16.mxu0 0
      %1021 = vmatmul.mubr.bf16.gmra.mrb[0].mxu0 %v977
      %v1022 = vpop.f32.mrb[0].mxu0
      %v1023 = vadd.f32 0.0, %v1022
      %v1024 = vpop.f32.mrb[0].mxu0
      %v1025 = vadd.f32 0.0, %v1024
      %v1026 = vpop.f32.mrb[0].mxu0
      %v1027 = vadd.f32 0.0, %v1026
      %v1028 = vpop.f32.mrb[0].mxu0
      %v1029 = vadd.f32 0.0, %v1028
      %1030 = vmatprep.mubr.bf16.mxu0 0
      %1031 = vmatmul.mubr.bf16.gmra.mrb[0].mxu0 %v980
      %v1032 = vpop.f32.mrb[0].mxu0
      %v1033 = vadd.f32 0.0, %v1032
      %v1034 = vpop.f32.mrb[0].mxu0
      %v1035 = vadd.f32 0.0, %v1034
      %v1036 = vpop.f32.mrb[0].mxu0
      %v1037 = vpop.f32.mrb[0].mxu0
      %1038 = vdwg.mxu0
      %v1039 = vadd.f32 %v931, %v1023
      %v1040 = vadd.f32 %v932, %v1025
      %v1041 = vadd.f32 %v933, %v1027
      %v1042 = vadd.f32 %v934, %v1029
      %v1043 = vadd.f32 %v935, %v1033
      %v1044 = vadd.f32 %v936, %v1035
      %1045 = vrot.lane.b32.xlu0 %v199, 111
      %v1046 = vpop.permute.xlu0 %1045
      %1047 = vrot.lane.b32.xlu0 %v200, 111
      %v1048 = vpop.permute.xlu0 %1047
      %vm1049 = vcmask 908288
      %v1050 = vsel %vm1049, %v1046, %v1048
      %v1054 = vsel %vm1049, %v1048, %v1046
      %s1055 = scalar_lea.vmem %s2, 16
      %v1056 = vld [vmem:[%s1055] sm:$0x3]
      %v1058 = vlaneseq
      %v1059 = vshrl.u32 %v1058, 7
      %v1060 = vsub.s32 0, %v1059
      %v1061 = vrot.slane %v1056, %v1060
      %v1062 = vlaneseq
      %v1063 = vshrl.u32 %v1062, 7
      %v1064 = vsub.s32 1, %v1063
      %v1065 = vrot.slane %v1056, %v1064
      %v1068 = vmul.f32 %v1050, %v1061
      %v1069 = vmul.f32 %v1054, %v1065
      %v1070 = vpack.c.bf16 %v1068, %v1068
      %v1071 = vpack.c.bf16 %v1069, %v1069
      %s1072 = scalar_lea.vmem %s1, 96
      %v1073 = vld [vmem:[%s1072] sm:$0xf]
      %v1074 = vld [vmem:[%s1072 + $0x4] sm:$0xf]
      %v1075 = vld [vmem:[%s1072 + $0x8] sm:$0x1]
      %v1079 = vunpack.c.l.b16 %v1073
      %v1080 = vunpack.c.l.b16 %v1074
      %v1081 = vunpack.c.l.b16 %v1075
      %v1082 = vpack.c.b16 %v1080, %v1079
      %v1083 = vpack.c.b16 %v1081, %v1081
      %v1085 = vsel %vm271, %v1082, 0
      %v1088 = vsel %vm271, %v1083, 0
      %v1091 = vsel %vm278, %v1070, 0
      %v1094 = vsel %vm278, %v1071, 0
      %1096 = vmatprep.subr.bf16.mxu0 %v1094
      %1097 = vmatpush1.bf16.msra.mxu0 %v1091
      %1098 = vmatprep.subr.bf16.mxu0 0
      %1099 = vmatpush1.bf16.msra.mxu0 0
      %1100 = vmatprep.subr.bf16.mxu0 0
      %1101 = vmatpush1.bf16.msra.mxu0 0
      %1102 = vmatprep.subr.bf16.mxu0 0
      %1103 = vmatpush1.bf16.msra.mxu0 0
      %1104 = vmatprep.subr.bf16.mxu0 0
      %1105 = vmatpush1.bf16.msra.mxu0 0
      %1106 = vmatprep.subr.bf16.mxu0 0
      %1107 = vmatpush1.bf16.msra.mxu0 0
      %1108 = vmatprep.subr.bf16.mxu0 0
      %1109 = vmatpush1.bf16.msra.mxu0 0
      %1110 = vmatprep.subr.bf16.mxu0 0
      %1111 = vmatpush1.bf16.msra.mxu0 0
      %1112 = vmatprep.subr.bf16.mxu0 0
      %1113 = vmatpush1.bf16.msra.mxu0 0
      %1114 = vmatprep.subr.bf16.mxu0 0
      %1115 = vmatpush1.bf16.msra.mxu0 0
      %1116 = vmatprep.subr.bf16.mxu0 0
      %1117 = vmatpush1.bf16.msra.mxu0 0
      %1118 = vmatprep.subr.bf16.mxu0 0
      %1119 = vmatpush1.bf16.msra.mxu0 0
      %1120 = vmatprep.subr.bf16.mxu0 0
      %1121 = vmatpush1.bf16.msra.mxu0 0
      %1122 = vmatprep.subr.bf16.mxu0 0
      %1123 = vmatpush1.bf16.msra.mxu0 0
      %1124 = vmatprep.subr.bf16.mxu0 0
      %1125 = vmatpush1.bf16.msra.mxu0 0
      %1126 = vmatprep.subr.bf16.mxu0 0
      %1127 = vmatpush1.bf16.msra.mxu0 0
      %1128 = vmatprep.mubr.bf16.mxu0 0
      %1129 = vmatmul.mubr.bf16.gmra.mrb[0].mxu0 %v1085
      %v1130 = vpop.f32.mrb[0].mxu0
      %v1131 = vadd.f32 0.0, %v1130
      %v1132 = vpop.f32.mrb[0].mxu0
      %v1133 = vadd.f32 0.0, %v1132
      %v1134 = vpop.f32.mrb[0].mxu0
      %v1135 = vadd.f32 0.0, %v1134
      %v1136 = vpop.f32.mrb[0].mxu0
      %v1137 = vadd.f32 0.0, %v1136
      %1138 = vmatprep.mubr.bf16.mxu0 0
      %1139 = vmatmul.mubr.bf16.gmra.mrb[0].mxu0 %v1088
      %v1140 = vpop.f32.mrb[0].mxu0
      %v1141 = vadd.f32 0.0, %v1140
      %v1142 = vpop.f32.mrb[0].mxu0
      %v1143 = vadd.f32 0.0, %v1142
      %v1144 = vpop.f32.mrb[0].mxu0
      %v1145 = vpop.f32.mrb[0].mxu0
      %1146 = vdwg.mxu0
      %v1147 = vadd.f32 %v1039, %v1131
      %v1148 = vadd.f32 %v1040, %v1133
      %v1149 = vadd.f32 %v1041, %v1135
      %v1150 = vadd.f32 %v1042, %v1137
      %v1151 = vadd.f32 %v1043, %v1141
      %v1152 = vadd.f32 %v1044, %v1143
      %v1153 = vld [vmem:[%s3] sm:$0xff]
      %v1154 = vld [vmem:[%s3 + $0x8] sm:$0xff]
      %v1155 = vld [vmem:[%s3 + $0x10] sm:$0x3]
      %1157 = vset.pattern.permute.xlu0 0
      %1158 = vperm.xlu0 %1157, %v1153
      %v1159 = vpop.permute.xlu0 %1158
      %1162 = vset.pattern.permute.xlu0 0
      %1163 = vperm.xlu0 %1162, %v1154
      %v1164 = vpop.permute.xlu0 %1163
      %1167 = vset.pattern.permute.xlu0 0
      %1168 = vperm.xlu0 %1167, %v1155
      %v1169 = vpop.permute.xlu0 %1168
      %v1171 = vadd.f32 %v1147, %v1159
      %v1172 = vadd.f32 %v1148, %v1159
      %v1173 = vadd.f32 %v1149, %v1164
      %v1174 = vadd.f32 %v1150, %v1164
      %v1175 = vadd.f32 %v1151, %v1169
      %v1176 = vadd.f32 %v1152, %v1169
      %1177 = vst [vmem:[%s197] sm:$0xff] %v1171
      %1178 = vst [vmem:[%s197 + $0x8] sm:$0xff] %v1172
      %1179 = vst [vmem:[%s197 + $0x10] sm:$0xff] %v1173
      %1180 = vst [vmem:[%s197 + $0x18] sm:$0xff] %v1174
      %1181 = vst [vmem:[%s197 + $0x20] sm:$0x3] %v1175
      %1182 = vst [vmem:[%s197 + $0x28] sm:$0x3] %v1176
      %p1183 = scmp.lt.s32.totalorder %s15, 1
      %s1184 = scalar_select %p1183, %s15, 1
      %s1185 = smul.addr %s1184, 6
      %s1186 = smul.addr %s1185, 8
      %s1187 = scalar_lea.vmem %s4, %s1186
      // Predicated region
      $region37: #{feature_align_pallas.4} parent=35 // pred_check
        %p1188 = pneg %p122
      $region38: #{feature_align_pallas.4} parent=35 // pred_check_branch
        %1190 = sbr.rel (%p1188) target = $region40
      $region39: #{feature_align_pallas.4} parent=35 // pred_region
        _
      $region40: #{feature_align_pallas.4} parent=35 // pred_fallthru
        _
    $region36: #{feature_align_pallas.4} parent=5 // pred_fallthru
      _
    %p1191 = scmp.le.s32.totalorder 2, %s10
    // Predicated region
    $region41: #{feature_align_pallas.4} parent=5 // pred_check
      %p1192 = pneg %p1191
    $region42: #{feature_align_pallas.4} parent=5 // pred_check_branch
      %1194 = sbr.rel (%p1192) target = $region44
    $region43: #{feature_align_pallas.4} parent=5 // pred_region
      %s1195 = ssub.s32 %s10, 2
      // Predicated region
      $region45: #{feature_align_pallas.4} parent=43 // pred_check
        %p1196 = pneg %p128
      $region46: #{feature_align_pallas.4} parent=43 // pred_check_branch
        %1198 = sbr.rel (%p1196) target = $region48
      $region47: #{feature_align_pallas.4} parent=43 // pred_region
        %p1199 = scmp.lt.s32.totalorder %s16, 1
        %s1200 = scalar_select %p1199, %s16, 1
        %s1201 = smul.addr %s1200, 6
        %s1202 = smul.addr %s1201, 8
        %s1203 = scalar_lea.vmem %s4, %s1202
      $region48: #{feature_align_pallas.4} parent=43 // pred_fallthru
        _
    $region44: #{feature_align_pallas.4} parent=5 // pred_fallthru
      _
  $region6: #{feature_align_pallas.4} parent=0 // loop_footer
    %s14 = sadd.s32 1, %s10
  $region7: #{feature_align_pallas.4} parent=0 // loop_footer_branch
    %9 = sbr.rel target = $region3
  $region8: #{feature_align_pallas.4} parent=0 // loop_exit
    _

// kernel: feature_align_pallas.5
$region0: #{feature_align_pallas.5}
  #allocation0 [shape = 'u32[]', space=smem, size = 0x4, offset = 0x4, fixed_abs, tag = 'smem constant byte address 0x4 - core index']
  #allocation1 [shape = 'u32[144,128]{1,0:T(1,128)}', space=vmem, size = 0x12000, scoped, tag = 'internal scratch']
  %s0 = inlined_call_operand.vmem [shape: bf16[2,72,256], index: 0, kind: input, shape index: {}]
  %s1 = inlined_call_operand.vmem [shape: bf16[8,72], index: 1, kind: input, shape index: {}]
  %s2 = inlined_call_operand.vmem [shape: bf16[2,8,256], index: 2, kind: input, shape index: {}]
  %s3 = inlined_call_operand.vmem [shape: f32[2,8,256], index: 3, kind: output, shape index: {}]
  %s4 = sld [smem:[#allocation0]]
  $region45: #{feature_align_pallas.5} parent=0
    _
  %s6 = ssub.s32 1, %s4
  %s7 = scalar_select 0, %s6, %s4
  loop: start=0, step=1, limit=4
  $region2: #{feature_align_pallas.5} parent=0 // loop_pre_header
    _
  $region3: #{feature_align_pallas.5} parent=0 // loop_header
    %s9 = sphi 0, %s13
    %p10 = scmp.ge.s32.totalorder %s9, 4
    %s16 = sphi 0, %s28
    %s17 = sphi 0, %s24
    %s18 = sphi 0, %s16
    %s19 = sphi 0, %s17
    %s20 = sphi 0, %s18
    %s21 = sphi 0, %s19
    %s33 = sphi 0, %s35
    %s36 = sphi 0, %s33
    %s37 = sphi 0, %s36
    %s53 = sphi 0, %s37
    %s57 = sphi 0, %s57
    %s59 = sphi 0, %s57
    %s60 = sphi 0, %s59
    %s74 = sphi 0, %s60
    %s82 = sphi 0, %s84
    %s85 = sphi 0, %s82
    %s86 = sphi 0, %s85
    %s102 = sphi 0, %s86
    %s110 = sphi 0, %s112
    %s113 = sphi 0, %s110
    %s114 = sphi 0, %s113
    %s130 = sphi 0, %s114
  $region4: #{feature_align_pallas.5} parent=0 // loop_header_branch
    %12 = sbr.rel (%p10) target = $region8
  $region5: #{feature_align_pallas.5} parent=0 // loop_body
    %s14 = ssub.s32 %s9, 1
    %s15 = ssub.s32 %s9, 2
    %s22 = sadd.s32 1, %s17
    %p23 = scmp.ge.s32.totalorder %s22, 1
    %s24 = scalar_select %p23, 0, %s22
    %s25 = sadd.s32 1, %s16
    %s26 = scalar_select %p23, %s25, %s16
    %p27 = scmp.ge.s32.totalorder %s26, 2
    %s28 = scalar_select %p27, 0, %s26
    %s29 = ssub.s32 %s16, %s28
    %s30 = ssub.s32 %s17, %s24
    %s31 = sor.u32 %s29, %s30
    %p32 = scmp.eq.s32.totalorder %s31, 0
    %s34 = sadd.s32 %s33, 1
    %s35 = scalar_select %p32, %s33, %s34
    %p38 = pneg %p32
    %p39 = scmp.eq.s32.totalorder %s9, 1
    %p40 = por %p38, %p39
    %p41 = scmp.ne.s32.totalorder %s33, %s36
    %p42 = scmp.eq.s32.totalorder %s9, 0
    %p43 = por %p41, %p42
    %p44 = scmp.ne.s32.totalorder %s33, %s36
    %p45 = scmp.eq.s32.totalorder %s14, 1
    %p46 = por %p44, %p45
    %p47 = scmp.ne.s32.totalorder %s36, %s37
    %p48 = scmp.eq.s32.totalorder %s14, 0
    %p49 = por %p47, %p48
    %p50 = scmp.ne.s32.totalorder %s36, %s37
    %p51 = scmp.eq.s32.totalorder %s15, 1
    %p52 = por %p50, %p51
    %p54 = scmp.ne.s32.totalorder %s37, %s53
    %p55 = scmp.eq.s32.totalorder %s15, 0
    %p56 = por %p54, %p55
    %s58 = sadd.s32 %s57, 1
    %p61 = scmp.eq.s32.totalorder %s9, 1
    %p62 = scmp.ne.s32.totalorder %s57, %s59
    %p63 = scmp.eq.s32.totalorder %s9, 0
    %p64 = por %p62, %p63
    %p65 = scmp.ne.s32.totalorder %s57, %s59
    %p66 = scmp.eq.s32.totalorder %s14, 1
    %p67 = por %p65, %p66
    %p68 = scmp.ne.s32.totalorder %s59, %s60
    %p69 = scmp.eq.s32.totalorder %s14, 0
    %p70 = por %p68, %p69
    %p71 = scmp.ne.s32.totalorder %s59, %s60
    %p72 = scmp.eq.s32.totalorder %s15, 1
    %p73 = por %p71, %p72
    %p75 = scmp.ne.s32.totalorder %s60, %s74
    %p76 = scmp.eq.s32.totalorder %s15, 0
    %p77 = por %p75, %p76
    %s78 = ssub.s32 %s16, %s28
    %s79 = ssub.s32 %s17, %s24
    %s80 = sor.u32 %s78, %s79
    %p81 = scmp.eq.s32.totalorder %s80, 0
    %s83 = sadd.s32 %s82, 1
    %s84 = scalar_select %p81, %s82, %s83
    %p87 = pneg %p81
    %p88 = scmp.eq.s32.totalorder %s9, 1
    %p89 = por %p87, %p88
    %p90 = scmp.ne.s32.totalorder %s82, %s85
    %p91 = scmp.eq.s32.totalorder %s9, 0
    %p92 = por %p90, %p91
    %p93 = scmp.ne.s32.totalorder %s82, %s85
    %p94 = scmp.eq.s32.totalorder %s14, 1
    %p95 = por %p93, %p94
    %p96 = scmp.ne.s32.totalorder %s85, %s86
    %p97 = scmp.eq.s32.totalorder %s14, 0
    %p98 = por %p96, %p97
    %p99 = scmp.ne.s32.totalorder %s85, %s86
    %p100 = scmp.eq.s32.totalorder %s15, 1
    %p101 = por %p99, %p100
    %p103 = scmp.ne.s32.totalorder %s86, %s102
    %p104 = scmp.eq.s32.totalorder %s15, 0
    %p105 = por %p103, %p104
    %s106 = ssub.s32 %s16, %s28
    %s107 = ssub.s32 %s17, %s24
    %s108 = sor.u32 %s106, %s107
    %p109 = scmp.eq.s32.totalorder %s108, 0
    %s111 = sadd.s32 %s110, 1
    %s112 = scalar_select %p109, %s110, %s111
    %p115 = pneg %p109
    %p116 = scmp.eq.s32.totalorder %s9, 1
    %p117 = por %p115, %p116
    %p118 = scmp.ne.s32.totalorder %s110, %s113
    %p119 = scmp.eq.s32.totalorder %s9, 0
    %p120 = por %p118, %p119
    %p121 = scmp.ne.s32.totalorder %s110, %s113
    %p122 = scmp.eq.s32.totalorder %s14, 1
    %p123 = por %p121, %p122
    %p124 = scmp.ne.s32.totalorder %s113, %s114
    %p125 = scmp.eq.s32.totalorder %s14, 0
    %p126 = por %p124, %p125
    %p127 = scmp.ne.s32.totalorder %s113, %s114
    %p128 = scmp.eq.s32.totalorder %s15, 1
    %p129 = por %p127, %p128
    %p131 = scmp.ne.s32.totalorder %s114, %s130
    %p132 = scmp.eq.s32.totalorder %s15, 0
    %p133 = por %p131, %p132
    %p134 = scmp.le.s32.totalorder 1, %s9
    %p135 = scmp.lt.s32.totalorder %s9, 3
    %p136 = pnand %p134, %p135
    %p137 = pneg %p136
    // Predicated region
    $region9: #{feature_align_pallas.5} parent=5 // pred_check
      _
    $region10: #{feature_align_pallas.5} parent=5 // pred_check_branch
      %139 = sbr.rel (%p136) target = $region12
    $region11: #{feature_align_pallas.5} parent=5 // pred_region
      %s140 = ssub.s32 %s9, 1
      // Predicated region
      $region13: #{feature_align_pallas.5} parent=11 // pred_check
        %p141 = pneg %p70
      $region14: #{feature_align_pallas.5} parent=11 // pred_check_branch
        %143 = sbr.rel (%p141) target = $region16
      $region15: #{feature_align_pallas.5} parent=11 // pred_region
        _
      $region16: #{feature_align_pallas.5} parent=11 // pred_fallthru
        _
    $region12: #{feature_align_pallas.5} parent=5 // pred_fallthru
      _
    %p144 = scmp.lt.s32.totalorder %s9, 2
    // Predicated region
    $region17: #{feature_align_pallas.5} parent=5 // pred_check
      %p145 = pneg %p144
    $region18: #{feature_align_pallas.5} parent=5 // pred_check_branch
      %147 = sbr.rel (%p145) target = $region20
    $region19: #{feature_align_pallas.5} parent=5 // pred_region
      // Predicated region
      $region21: #{feature_align_pallas.5} parent=19 // pred_check
        %p148 = pneg %p43
      $region22: #{feature_align_pallas.5} parent=19 // pred_check_branch
        %150 = sbr.rel (%p148) target = $region24
      $region23: #{feature_align_pallas.5} parent=19 // pred_region
        %s151 = smul.u32 2, %s17
        %p152 = scmp.lt.s32.totalorder %s16, 1
        %s153 = scalar_select %p152, %s16, 1
        %p154 = scmp.lt.s32.totalorder %s151, 1
        %s155 = scalar_select %p154, %s151, 1
        %s156 = smul.addr %s153, 18
        %s157 = sadd.s32 %s155, %s156
        %s158 = smul.addr %s157, 4
        %s159 = scalar_lea.vmem %s0, %s158
        %s160 = smul.u32 2, %s17
      $region24: #{feature_align_pallas.5} parent=19 // pred_fallthru
        _
      // Predicated region
      $region25: #{feature_align_pallas.5} parent=19 // pred_check
        %p161 = pneg %p92
      $region26: #{feature_align_pallas.5} parent=19 // pred_check_branch
        %163 = sbr.rel (%p161) target = $region28
      $region27: #{feature_align_pallas.5} parent=19 // pred_region
        %s164 = smul.u32 2, %s17
        %p165 = scmp.lt.s32.totalorder %s16, 1
        %s166 = scalar_select %p165, %s16, 1
        %p167 = scmp.lt.s32.totalorder %s164, 1
        %s168 = scalar_select %p167, %s164, 1
        %s169 = smul.addr %s166, 2
        %s170 = sadd.s32 %s168, %s169
        %s171 = smul.addr %s170, 4
        %s172 = scalar_lea.vmem %s2, %s171
        %s173 = smul.u32 2, %s17
      $region28: #{feature_align_pallas.5} parent=19 // pred_fallthru
        _
    $region20: #{feature_align_pallas.5} parent=5 // pred_fallthru
      _
    %p174 = scmp.le.s32.totalorder 1, %s9
    %p175 = scmp.lt.s32.totalorder %s9, 3
    %p176 = pnand %p174, %p175
    %p177 = pneg %p176
    // Predicated region
    $region29: #{feature_align_pallas.5} parent=5 // pred_check
      _
    $region30: #{feature_align_pallas.5} parent=5 // pred_check_branch
      %179 = sbr.rel (%p176) target = $region32
    $region31: #{feature_align_pallas.5} parent=5 // pred_region
      %s180 = ssub.s32 %s9, 1
      %s181 = smul.u32 2, %s19
      %p182 = scmp.lt.s32.totalorder %s18, 1
      %s183 = scalar_select %p182, %s18, 1
      %p184 = scmp.lt.s32.totalorder %s181, 1
      %s185 = scalar_select %p184, %s181, 1
      %s186 = smul.addr %s183, 18
      %s187 = sadd.s32 %s185, %s186
      %s188 = smul.addr %s187, 4
      %s189 = scalar_lea.vmem %s0, %s188
      %p190 = pneg %p49
      %p191 = pneg %p46
      %p192 = pneg %p70
      %p193 = pneg %p67
      %s194 = smul.u32 2, %s19
      %p195 = scmp.lt.s32.totalorder %s18, 1
      %s196 = scalar_select %p195, %s18, 1
      %p197 = scmp.lt.s32.totalorder %s194, 1
      %s198 = scalar_select %p197, %s194, 1
      %s199 = smul.addr %s196, 2
      %s200 = sadd.s32 %s198, %s199
      %s201 = smul.addr %s200, 4
      %s202 = scalar_lea.vmem %s2, %s201
      %p203 = pneg %p98
      %p204 = pneg %p95
      %p205 = pneg %p126
      %p206 = pneg %p123
      %s207 = smul.u32 2, %s19
      %p208 = scmp.lt.s32.totalorder %s18, 1
      %s209 = scalar_select %p208, %s18, 1
      %p210 = scmp.lt.s32.totalorder %s207, 1
      %s211 = scalar_select %p210, %s207, 1
      %s212 = smul.addr %s209, 2
      %s213 = sadd.s32 %s211, %s212
      %s214 = smul.addr %s213, 8
      %s215 = scalar_lea.vmem %s3, %s214
      %s216 = smul.u32 2, %s19
      %p217 = scmp.lt.s32.totalorder %s18, 1
      %s218 = scalar_select %p217, %s18, 1
      %p219 = scmp.lt.s32.totalorder %s216, 1
      %s220 = scalar_select %p219, %s216, 1
      %s221 = smul.addr %s218, 18
      %s222 = sadd.s32 %s220, %s221
      %s223 = smul.addr %s222, 4
      %s224 = scalar_lea.vmem %s0, %s223
      %s225 = smul.u32 2, %s19
      %s226 = smul.u32 2, %s19
      %p227 = scmp.lt.s32.totalorder %s18, 1
      %s228 = scalar_select %p227, %s18, 1
      %p229 = scmp.lt.s32.totalorder %s226, 1
      %s230 = scalar_select %p229, %s226, 1
      %s231 = smul.addr %s228, 2
      %s232 = sadd.s32 %s230, %s231
      %s233 = smul.addr %s232, 4
      %s234 = scalar_lea.vmem %s2, %s233
      %s235 = smul.u32 2, %s19
      %s236 = smul.u32 2, %s19
      %p237 = scmp.lt.s32.totalorder %s18, 1
      %s238 = scalar_select %p237, %s18, 1
      %p239 = scmp.lt.s32.totalorder %s236, 1
      %s240 = scalar_select %p239, %s236, 1
      %s241 = smul.addr %s238, 2
      %s242 = sadd.s32 %s240, %s241
      %s243 = smul.addr %s242, 8
      %s244 = scalar_lea.vmem %s3, %s243
      %s245 = smul.u32 2, %s19
      %v247 = vld [vmem:[%s1] sm:$0xf]
      %v248 = vld [vmem:[%s224] sm:$0xff]
      %v249 = vld [vmem:[%s224 + $0x8] sm:$0xff]
      %v250 = vld [vmem:[%s224 + $0x10] sm:$0xff]
      %v251 = vld [vmem:[%s224 + $0x18] sm:$0xff]
      %v252 = vld [vmem:[%s224 + $0x20] sm:$0xff]
      %v253 = vld [vmem:[%s224 + $0x28] sm:$0xff]
      %v254 = vld [vmem:[%s224 + $0x30] sm:$0xff]
      %v255 = vld [vmem:[%s224 + $0x38] sm:$0xff]
      %v256 = vld [vmem:[%s224 + $0x40] sm:$0xff]
      %v266 = vunpack.c.l.b16 %v248
      %v267 = vunpack.c.h.b16 %v248
      %v268 = vunpack.c.l.b16 %v249
      %v269 = vunpack.c.h.b16 %v249
      %v270 = vunpack.c.l.b16 %v250
      %v271 = vunpack.c.h.b16 %v250
      %v272 = vunpack.c.l.b16 %v251
      %v273 = vunpack.c.h.b16 %v251
      %v274 = vunpack.c.l.b16 %v252
      %v275 = vunpack.c.h.b16 %v252
      %v276 = vunpack.c.l.b16 %v253
      %v277 = vunpack.c.h.b16 %v253
      %v278 = vunpack.c.l.b16 %v254
      %v279 = vunpack.c.h.b16 %v254
      %v280 = vunpack.c.l.b16 %v255
      %v281 = vunpack.c.h.b16 %v255
      %v282 = vunpack.c.l.b16 %v256
      %v283 = vunpack.c.h.b16 %v256
      %v284 = vpack.c.b16 %v268, %v266
      %v285 = vpack.c.b16 %v269, %v267
      %v286 = vpack.c.b16 %v272, %v270
      %v287 = vpack.c.b16 %v273, %v271
      %v288 = vpack.c.b16 %v276, %v274
      %v289 = vpack.c.b16 %v277, %v275
      %v290 = vpack.c.b16 %v280, %v278
      %v291 = vpack.c.b16 %v281, %v279
      %v292 = vpack.c.b16 %v282, %v282
      %v293 = vpack.c.b16 %v283, %v283
      %vm302 = vcmask 588800
      %v304 = vsel %vm302, %v247, 0
      %vm306 = vcmask 1043456
      %v308 = vsel %vm306, %v292, 0
      %v311 = vsel %vm306, %v293, 0
      %313 = vmatprep.subr.bf16.mxu0 %v285
      %314 = vmatpush1.bf16.msra.mxu0 %v284
      %315 = vmatprep.subr.bf16.mxu0 %v287
      %316 = vmatpush1.bf16.msra.mxu0 %v286
      %317 = vmatprep.subr.bf16.mxu0 %v289
      %318 = vmatpush1.bf16.msra.mxu0 %v288
      %319 = vmatprep.subr.bf16.mxu0 %v291
      %320 = vmatpush1.bf16.msra.mxu0 %v290
      %321 = vmatprep.subr.bf16.mxu0 %v311
      %322 = vmatpush1.bf16.msra.mxu0 %v308
      %323 = vmatprep.subr.bf16.mxu0 0
      %324 = vmatpush1.bf16.msra.mxu0 0
      %325 = vmatprep.subr.bf16.mxu0 0
      %326 = vmatpush1.bf16.msra.mxu0 0
      %327 = vmatprep.subr.bf16.mxu0 0
      %328 = vmatpush1.bf16.msra.mxu0 0
      %329 = vmatprep.subr.bf16.mxu0 0
      %330 = vmatpush1.bf16.msra.mxu0 0
      %331 = vmatprep.subr.bf16.mxu0 0
      %332 = vmatpush1.bf16.msra.mxu0 0
      %333 = vmatprep.subr.bf16.mxu0 0
      %334 = vmatpush1.bf16.msra.mxu0 0
      %335 = vmatprep.subr.bf16.mxu0 0
      %336 = vmatpush1.bf16.msra.mxu0 0
      %337 = vmatprep.subr.bf16.mxu0 0
      %338 = vmatpush1.bf16.msra.mxu0 0
      %339 = vmatprep.subr.bf16.mxu0 0
      %340 = vmatpush1.bf16.msra.mxu0 0
      %341 = vmatprep.subr.bf16.mxu0 0
      %342 = vmatpush1.bf16.msra.mxu0 0
      %343 = vmatprep.subr.bf16.mxu0 0
      %344 = vmatpush1.bf16.msra.mxu0 0
      %345 = vmatprep.mubr.bf16.mxu0 0
      %346 = vmatmul.mubr.bf16.gmra.mrb[0].mxu0 %v304
      %v347 = vpop.f32.mrb[0].mxu0
      %v348 = vadd.f32 0.0, %v347
      %v349 = vpop.f32.mrb[0].mxu0
      %v350 = vadd.f32 0.0, %v349
      %v351 = vpop.f32.mrb[0].mxu0
      %v352 = vpop.f32.mrb[0].mxu0
      %353 = vdwg.mxu0
      %v354 = vmax.f32 %v348, 0.0
      %v355 = vmax.f32 %v350, 0.0
      %v356 = vld [vmem:[%s234] sm:$0xff]
      %v357 = vunpack.c.l.bf16 %v356
      %v358 = vunpack.c.h.bf16 %v356
      %v359 = vadd.f32 %v354, %v357
      %v360 = vadd.f32 %v355, %v358
      %361 = vst [vmem:[%s244] sm:$0xff] %v359
      %362 = vst [vmem:[%s244 + $0x8] sm:$0xff] %v360
      %s363 = smul.u32 2, %s19
      %p364 = scmp.lt.s32.totalorder %s18, 1
      %s365 = scalar_select %p364, %s18, 1
      %p366 = scmp.lt.s32.totalorder %s363, 1
      %s367 = scalar_select %p366, %s363, 1
      %s368 = smul.addr %s365, 2
      %s369 = sadd.s32 %s367, %s368
      %s370 = smul.addr %s369, 8
      %s371 = scalar_lea.vmem %s3, %s370
      // Predicated region
      $region33: #{feature_align_pallas.5} parent=31 // pred_check
        %p372 = pneg %p123
      $region34: #{feature_align_pallas.5} parent=31 // pred_check_branch
        %374 = sbr.rel (%p372) target = $region36
      $region35: #{feature_align_pallas.5} parent=31 // pred_region
        %s375 = smul.u32 2, %s19
      $region36: #{feature_align_pallas.5} parent=31 // pred_fallthru
        _
    $region32: #{feature_align_pallas.5} parent=5 // pred_fallthru
      _
    %p376 = scmp.le.s32.totalorder 2, %s9
    // Predicated region
    $region37: #{feature_align_pallas.5} parent=5 // pred_check
      %p377 = pneg %p376
    $region38: #{feature_align_pallas.5} parent=5 // pred_check_branch
      %379 = sbr.rel (%p377) target = $region40
    $region39: #{feature_align_pallas.5} parent=5 // pred_region
      %s380 = ssub.s32 %s9, 2
      // Predicated region
      $region41: #{feature_align_pallas.5} parent=39 // pred_check
        %p381 = pneg %p129
      $region42: #{feature_align_pallas.5} parent=39 // pred_check_branch
        %383 = sbr.rel (%p381) target = $region44
      $region43: #{feature_align_pallas.5} parent=39 // pred_region
        %s384 = smul.u32 2, %s21
        %p385 = scmp.lt.s32.totalorder %s20, 1
        %s386 = scalar_select %p385, %s20, 1
        %p387 = scmp.lt.s32.totalorder %s384, 1
        %s388 = scalar_select %p387, %s384, 1
        %s389 = smul.addr %s386, 2
        %s390 = sadd.s32 %s388, %s389
        %s391 = smul.addr %s390, 8
        %s392 = scalar_lea.vmem %s3, %s391
      $region44: #{feature_align_pallas.5} parent=39 // pred_fallthru
        _
    $region40: #{feature_align_pallas.5} parent=5 // pred_fallthru
      _
  $region6: #{feature_align_pallas.5} parent=0 // loop_footer
    %s13 = sadd.s32 1, %s9
  $region7: #{feature_align_pallas.5} parent=0 // loop_footer_branch
    %8 = sbr.rel target = $region3
  $region8: #{feature_align_pallas.5} parent=0 // loop_exit
    _

</llo_original>
